<compile_context>
chip_gen: v5e
topology: v5e:2x2
jax: 0.10.0
libtpu: 0.0.40
codegen_flags: <defaults>
</compile_context>

<pallas_src>
import functools

import jax
import jax.numpy as jnp
from jax.experimental import pallas as pl
from jax.experimental.pallas import tpu as pltpu

_EPS = 1e-5  # PyTorch GroupNorm default eps


# ---------------------------------------------------------------------------
# Wrapper-side weight preprocessing (runs once, outside the kernel)
# ---------------------------------------------------------------------------
def _folded_conv_weights(w, W):
    """Fold the W axis ('SAME' padding) and all 9 (kd, kh) taps of a 3x3x3 conv
    into one matrix so the in-kernel conv is a single MXU matmul.

    w: [3, 3, 3, Cin, Cout] (DHWIO)  ->  [9*Cin*W, Cout*W] with
       B[(kd, kh, ci, wi), (co, wo)] = w[kd, kh, wi - wo + 1, ci, co]
    (zero outside the width-3 band).  Rows are kd-major, then kh, then
    (ci, wi); the merged lane axis is channel-major (c, w)."""
    _, _, _, Ci, Co = w.shape
    wi = jnp.arange(W)[:, None]          # input  w index
    wo = jnp.arange(W)[None, :]          # output w index
    kw = wi - wo + 1                     # [W, W]
    valid = (kw >= 0) & (kw <= 2)
    kw_c = jnp.clip(kw, 0, 2)
    b = w[:, :, kw_c, :, :]                                        # [3,3,Wi,Wo,Ci,Co]
    b = b * valid[None, None, :, :, None, None].astype(w.dtype)
    b = jnp.transpose(b, (0, 1, 4, 2, 5, 3))                        # [3,3,Ci,Wi,Co,Wo]
    return b.reshape(9 * Ci * W, Co * W)


def _vreg_padded_bytes(shape, itemsize):
    s = list(shape)
    if len(s) >= 2:
        s[-2] = -(-s[-2] // 8) * 8
    s[-1] = -(-s[-1] // 128) * 128
    n = itemsize
    for d in s:
        n *= d
    return n


# ---------------------------------------------------------------------------
# In-kernel helpers
# ---------------------------------------------------------------------------
def _conv3x3_fat(x_slab, sh_ref, b_ref, m0, m2, D, H):
    """3x3x3 'SAME' conv as ONE fat MXU matmul (K = 9 * C * W).

    x_slab: [D*H, K] f32 (merged (c, w) lane layout; the W halo lives in b_ref).
    sh_ref: VMEM scratch [(D+2)*H + 2, K] f32.  Rows [H+1, H+1+D*H) hold the
            sample; all other rows are kept zero (D halo + one wrap row each
            side) so the three h-shifted windows are plain offset loads.
    b_ref:  Ref[9*K, n_out] bf16 folded weights, rows ordered (kd, kh, c, w).
    m0/m2:  [(D+2)*H, 1] f32 masks zeroing rows whose h-1 / h+1 tap crosses the
            H boundary of a d-slice.
    Returns [D*H, n_out] f32."""
    DH = D * H
    rows = (D + 2) * H
    K = x_slab.shape[-1]

    # Re-zero only the rim (cheap); the interior is fully overwritten below.
    zrim = jnp.zeros((H + 1, K), jnp.float32)
    sh_ref[0:H + 1, :] = zrim
    sh_ref[H + 1 + DH:rows + 2, :] = zrim
    sh_ref[H + 1:H + 1 + DH, :] = x_slab

    # h-shifted windows (kh = 0, 1, 2), hoisted out of the kd tap loop; cast to
    # bf16 immediately so the im2col concats move half the bytes.
    s_m = (sh_ref[0:rows, :] * m0).astype(jnp.bfloat16)      # tap h-1
    s_c = sh_ref[1:rows + 1, :].astype(jnp.bfloat16)         # tap h
    s_p = (sh_ref[2:rows + 2, :] * m2).astype(jnp.bfloat16)  # tap h+1
    cat = jnp.concatenate([s_m, s_c, s_p], axis=1)           # [(D+2)*H, 3K]

    # kd taps are sublane-tile-aligned row windows (offsets multiple of H).
    col = jnp.concatenate([cat[kd * H:kd * H + DH, :] for kd in range(3)],
                          axis=1)                            # [D*H, 9K]
    return jnp.dot(col, b_ref[...], preferred_element_type=jnp.float32)


def _gn_silu(y, gamma_col, beta_col, p2):
    """GroupNorm + SiLU on a lane-dense [D*H, C*W] f32 tile (columns (c, w)).

    p2[j, k] = 1/(D*H*W*cpg) when columns j, k are in the same channel group
    (block-diagonal), so `row_sums @ p2` is the per-group mean broadcast back
    to every column.  Two-pass (mean-subtracted) variance keeps f32 accuracy.
    """
    mean_col = jnp.dot(jnp.sum(y, axis=0, keepdims=True), p2,
                       preferred_element_type=jnp.float32)          # [1, C*W]
    d = y - mean_col
    var_col = jnp.dot(jnp.sum(d * d, axis=0, keepdims=True), p2,
                      preferred_element_type=jnp.float32)           # [1, C*W]
    yn = d * jax.lax.rsqrt(var_col + _EPS) * gamma_col + beta_col
    # SiLU = yn * sigmoid(yn); exp and approx reciprocal ride the EUP slot.
    return yn * pl.reciprocal(1.0 + jnp.exp(-yn), approx=True)


def _fused_core(x_ref, b1_ref, b2_ref, g_ref, be_ref, p2_ref, mask_ref, bs_ref,
                o_ref, sh1_ref, sh2_ref, D, H):
    x = x_ref[0]                                   # [D*H, K1] f32 (f32 shortcut)
    m0 = mask_ref[:, 0:1]
    m2 = mask_ref[:, 1:2]
    gamma = g_ref[...]
    beta = be_ref[...]
    p2 = p2_ref[...]

    # stage 1: first_conv -> second_norm -> SiLU   (as in the PyTorch forward)
    y1 = _conv3x3_fat(x, sh1_ref, b1_ref, m0, m2, D, H)
    h1 = _gn_silu(y1, gamma, beta, p2)
    # stage 2: second_conv -> second_norm -> SiLU  (h1 never leaves VMEM)
    y2 = _conv3x3_fat(h1, sh2_ref, b2_ref, m0, m2, D, H)
    h2 = _gn_silu(y2, gamma, beta, p2)
    # TODO(synk): nn.Dropout3d(p=0.2) is identity here (eval semantics).

    # shortcut + residual, kept in f32 (review correctness concern)
    if bs_ref is None:
        sc = x[:, :o_ref.shape[2]]                 # identity (original channels lead)
    else:
        sc = jnp.dot(x, bs_ref[...], preferred_element_type=jnp.float32)
    o_ref[0] = (h2 + sc).astype(o_ref.dtype)


def _kernel_proj(x_ref, b1_ref, b2_ref, g_ref, be_ref, p2_ref, mask_ref, bs_ref,
                 o_ref, sh1_ref, sh2_ref, *, D, H):
    _fused_core(x_ref, b1_ref, b2_ref, g_ref, be_ref, p2_ref, mask_ref, bs_ref,
                o_ref, sh1_ref, sh2_ref, D, H)


def _kernel_identity(x_ref, b1_ref, b2_ref, g_ref, be_ref, p2_ref, mask_ref,
                     o_ref, sh1_ref, sh2_ref, *, D, H):
    _fused_core(x_ref, b1_ref, b2_ref, g_ref, be_ref, p2_ref, mask_ref, None,
                o_ref, sh1_ref, sh2_ref, D, H)


# ---------------------------------------------------------------------------
# Wrapper
# ---------------------------------------------------------------------------
def residual_block_pallas(x, w1, w2, ws, gamma2, beta2, *, n_groups):
    """x: [N, D, H, W, Cin] f32; w1: [3,3,3,Cin,Cout]; w2: [3,3,3,Cout,Cout];
    ws: [Cin, Cout] (1x1x1 shortcut, ignored if Cin == Cout);
    gamma2/beta2: [Cout] (second_norm params; the forward uses them twice)."""
    N, D, H, W, Cin = x.shape
    Cout = w1.shape[-1]
    assert Cout % n_groups == 0
    cpg = Cout // n_groups
    L = Cout * W                 # merged (c, w) output lane width
    S = cpg * W                  # lanes per GroupNorm group (contiguous blocks)
    rows = (D + 2) * H

    # Pad Cin so the merged input lane width reaches a full 128-lane vreg.
    Cin_p = Cin
    if W * Cin < 128 and 128 % W == 0:
        Cin_p = max(Cin, 128 // W)
    K1 = Cin_p * W

    # Merged (c, w) activation layout; x stays f32 so the residual add is f32.
    x_cw = jnp.transpose(x, (0, 1, 2, 4, 3))                       # [N,D,H,Cin,W]
    if Cin_p != Cin:
        x_cw = jnp.pad(x_cw, ((0, 0),) * 3 + ((0, Cin_p - Cin), (0, 0)))
    x_m = x_cw.reshape(N, D * H, K1).astype(jnp.float32)

    w1_p = w1
    if Cin_p != Cin:
        w1_p = jnp.pad(w1, ((0, 0),) * 3 + ((0, Cin_p - Cin), (0, 0)))
    b1 = _folded_conv_weights(w1_p, W).astype(jnp.bfloat16)        # [9*K1, L]
    b2 = _folded_conv_weights(w2, W).astype(jnp.bfloat16)          # [9*L,  L]

    # Per-column GN affine params (columns ordered (c, w)) and the
    # block-diagonal group-mean scatter (includes the 1/count factor).
    gamma_col = jnp.repeat(gamma2.astype(jnp.float32), W).reshape(1, L)
    beta_col = jnp.repeat(beta2.astype(jnp.float32), W).reshape(1, L)
    p2 = jnp.kron(jnp.eye(n_groups, dtype=jnp.float32),
                  jnp.ones((S, S), jnp.float32)) / float(D * H * W * cpg)

    # Row masks for the two h-shifted conv windows (h-1 / h+1 wrap rows).
    r = jnp.arange(rows)
    masks = jnp.stack([(r % H != 0).astype(jnp.float32),
                       (r % H != H - 1).astype(jnp.float32)], axis=1)   # [rows, 2]

    has_proj = Cin != Cout

    def _const_spec(shape):
        zero_idx = (0,) * len(shape)
        index_map = lambda n: zero_idx
        try:   # single-buffer grid-invariant operands (pure VMEM headroom)
            return pl.BlockSpec(shape, index_map, pipeline_mode=pl.Buffered(1))
        except Exception:
            return pl.BlockSpec(shape, index_map)

    in_specs = [
        pl.BlockSpec((1, D * H, K1), lambda n: (n, 0, 0)),
        _const_spec((9 * K1, L)),
        _const_spec((9 * L, L)),
        _const_spec((1, L)),
        _const_spec((1, L)),
        _const_spec((L, L)),
        _const_spec((rows, 2)),
    ]
    args = [x_m, b1, b2, gamma_col, beta_col, p2, masks]
    if has_proj:
        ws_p = ws.astype(jnp.float32)
        if Cin_p != Cin:
            ws_p = jnp.pad(ws_p, ((0, Cin_p - Cin), (0, 0)))
        bs = jnp.kron(ws_p, jnp.eye(W, dtype=jnp.float32))          # [K1, L] f32
        in_specs.append(_const_spec((K1, L)))
        args.append(bs)
        kernel = functools.partial(_kernel_proj, D=D, H=H)
    else:
        kernel = functools.partial(_kernel_identity, D=D, H=H)

    # VMEM budget: double-buffered I/O + single-buffered constants + in-kernel
    # working values, with ~1.5x headroom, capped at ~80% of the chip's VMEM.
    io_b = 2 * (_vreg_padded_bytes((1, D * H, K1), 4)
                + _vreg_padded_bytes((1, D * H, L), 4))
    const_b = (_vreg_padded_bytes((9 * K1, L), 2) + _vreg_padded_bytes((9 * L, L), 2)
               + 2 * _vreg_padded_bytes((1, L), 4) + _vreg_padded_bytes((L, L), 4)
               + _vreg_padded_bytes((rows, 2), 4))
    if has_proj:
        const_b += _vreg_padded_bytes((K1, L), 4)
    kmax = max(K1, L)
    work_b = (2 * _vreg_padded_bytes((rows + 2, K1), 4)      # h-window scratch 1 (+slack)
              + 2 * _vreg_padded_bytes((rows + 2, L), 4)     # h-window scratch 2 (+slack)
              + 2 * _vreg_padded_bytes((rows, 3 * kmax), 2)  # bf16 windows + kh concat
              + _vreg_padded_bytes((D * H, 9 * kmax), 2)     # bf16 im2col
              + 8 * _vreg_padded_bytes((D * H, L), 4))       # y / d / h / shortcut temps
    try:
        cap = int(pltpu.get_tpu_info().vmem_capacity_bytes)
    except Exception:
        cap = 64 * 1024 * 1024
    vmem_limit = int(min(int(0.8 * cap),
                         max(32 * 1024 * 1024,
                             int(1.5 * (io_b + const_b + work_b)))))

    out = pl.pallas_call(
        kernel,
        out_shape=jax.ShapeDtypeStruct((N, D * H, L), jnp.float32),
        grid=(N,),
        in_specs=in_specs,
        out_specs=pl.BlockSpec((1, D * H, L), lambda n: (n, 0, 0)),
        scratch_shapes=[pltpu.VMEM((rows + 2, K1), jnp.float32),
                        pltpu.VMEM((rows + 2, L), jnp.float32)],
        compiler_params=pltpu.CompilerParams(
            dimension_semantics=("parallel",),
            vmem_limit_bytes=vmem_limit),
    )(*args)

    return jnp.transpose(out.reshape(N, D, H, Cout, W), (0, 1, 2, 4, 3))


# ---------------------------------------------------------------------------
# Pure-JAX reference (mirrors the PyTorch forward, eval-mode dropout, f32)
# ---------------------------------------------------------------------------
def residual_block_ref(x, w1, w2, ws, gamma2, beta2, *, n_groups):
    def conv(a, w):
        return jax.lax.conv_general_dilated(
            a, w, window_strides=(1, 1, 1), padding="SAME",
            dimension_numbers=("NDHWC", "DHWIO", "NDHWC"))

    def gn(a):
        N, D, H, W, C = a.shape
        cpg = C // n_groups
        ag = a.reshape(N, D, H, W, n_groups, cpg)
        mean = ag.mean(axis=(1, 2, 3, 5), keepdims=True)
        var = ((ag - mean) ** 2).mean(axis=(1, 2, 3, 5), keepdims=True)
        an = ((ag - mean) / jnp.sqrt(var + _EPS)).reshape(N, D, H, W, C)
        return an * gamma2.reshape(1, 1, 1, 1, C) + beta2.reshape(1, 1, 1, 1, C)

    def silu(a):
        return a * (1.0 / (1.0 + jnp.exp(-a)))

    h = silu(gn(conv(x, w1)))          # second_norm (as in the PyTorch forward)
    h = silu(gn(conv(h, w2)))          # second_norm again
    Cout = w1.shape[-1]
    sc = jnp.einsum("ndhwc,co->ndhwo", x, ws) if x.shape[-1] != Cout else x
    return h + sc


if __name__ == "__main__":
    N, Cin, Cout, D, H, W, G = 2, 4, 8, 4, 8, 16, 8   # W*Cout = 128 (lane-dense)

    key = jax.random.PRNGKey(0)
    k1, k2, k3, k4, k5, k6 = jax.random.split(key, 6)
    x_ncdhw = jax.random.normal(k1, (N, Cin, D, H, W), jnp.float32)   # PyTorch layout
    w1 = 0.1 * jax.random.normal(k2, (3, 3, 3, Cin, Cout), jnp.float32)
    w2 = 0.1 * jax.random.normal(k3, (3, 3, 3, Cout, Cout), jnp.float32)
    ws = 0.1 * jax.random.normal(k4, (Cin, Cout), jnp.float32)
    gamma2 = 1.0 + 0.1 * jax.random.normal(k5, (Cout,), jnp.float32)  # second_norm.weight
    beta2 = 0.1 * jax.random.normal(k6, (Cout,), jnp.float32)         # second_norm.bias

    # NCDHW -> NDHWC for the kernel
    x = jnp.transpose(x_ncdhw, (0, 2, 3, 4, 1))

    out = residual_block_pallas(x, w1, w2, ws, gamma2, beta2, n_groups=G)
    out = jax.block_until_ready(out)

    ref = residual_block_ref(x, w1, w2, ws, gamma2, beta2, n_groups=G)
    assert out.shape == (N, D, H, W, Cout)
    # Conv matmuls run on the MXU in bf16 (f32 accumulation); GN stats and the
    # residual/shortcut path are f32, so tolerance is tighter than before.
    assert bool(jnp.allclose(out, ref, rtol=4e-2, atol=4e-2)), "mismatch vs JAX reference"

    print("KERNEL_OK")
</pallas_src>

<mosaic_0001>
module attributes {stable_mosaic.version = 11 : i64} {
  func.func @_kernel_proj(%arg0: i32, %arg1: memref<1x32x128xf32, #tpu.memory_space<vmem>>, %arg2: memref<1152x128xbf16, #tpu.memory_space<vmem>>, %arg3: memref<1152x128xbf16, #tpu.memory_space<vmem>>, %arg4: memref<1x128xf32, #tpu.memory_space<vmem>>, %arg5: memref<1x128xf32, #tpu.memory_space<vmem>>, %arg6: memref<128x128xf32, #tpu.memory_space<vmem>>, %arg7: memref<48x2xf32, #tpu.memory_space<vmem>>, %arg8: memref<128x128xf32, #tpu.memory_space<vmem>>, %arg9: memref<1x32x128xf32, #tpu.memory_space<vmem>>, %arg10: memref<50x128xf32, #tpu.memory_space<vmem>>, %arg11: memref<50x128xf32, #tpu.memory_space<vmem>>) attributes {dimension_semantics = [#tpu.dimension_semantics<parallel>], iteration_bounds = array<i64: 2>, scalar_prefetch = 0 : i64, scratch_operands = 2 : i64, tpu.core_type = #tpu.core_type<tc>, window_params = [{transform_indices = @transform_0, window_bounds = array<i64: 1, 32, 128>}, {pipeline_mode = #tpu.pipeline_mode<synchronous>, transform_indices = @transform_1, window_bounds = array<i64: 1152, 128>}, {pipeline_mode = #tpu.pipeline_mode<synchronous>, transform_indices = @transform_2, window_bounds = array<i64: 1152, 128>}, {pipeline_mode = #tpu.pipeline_mode<synchronous>, transform_indices = @transform_3, window_bounds = array<i64: 1, 128>}, {pipeline_mode = #tpu.pipeline_mode<synchronous>, transform_indices = @transform_4, window_bounds = array<i64: 1, 128>}, {pipeline_mode = #tpu.pipeline_mode<synchronous>, transform_indices = @transform_5, window_bounds = array<i64: 128, 128>}, {pipeline_mode = #tpu.pipeline_mode<synchronous>, transform_indices = @transform_6, window_bounds = array<i64: 48, 2>}, {pipeline_mode = #tpu.pipeline_mode<synchronous>, transform_indices = @transform_7, window_bounds = array<i64: 128, 128>}, {transform_indices = @transform_8, window_bounds = array<i64: 1, 32, 128>}]} {
    %c0 = arith.constant 0 : index
    %c0_0 = arith.constant 0 : index
    %c0_1 = arith.constant 0 : index
    %0 = vector.load %arg1[%c0, %c0_0, %c0_1] : memref<1x32x128xf32, #tpu.memory_space<vmem>>, vector<1x32x128xf32>
    %1 = vector.shape_cast %0 : vector<1x32x128xf32> to vector<32x128xf32>
    %c0_2 = arith.constant 0 : index
    %c0_3 = arith.constant 0 : index
    %2 = vector.load %arg7[%c0_2, %c0_3] : memref<48x2xf32, #tpu.memory_space<vmem>>, vector<48x1xf32>
    %c0_4 = arith.constant 0 : index
    %c1 = arith.constant 1 : index
    %3 = vector.load %arg7[%c0_4, %c1] : memref<48x2xf32, #tpu.memory_space<vmem>>, vector<48x1xf32>
    %c0_5 = arith.constant 0 : index
    %c0_6 = arith.constant 0 : index
    %4 = vector.load %arg4[%c0_5, %c0_6] : memref<1x128xf32, #tpu.memory_space<vmem>>, vector<1x128xf32>
    %c0_7 = arith.constant 0 : index
    %c0_8 = arith.constant 0 : index
    %5 = vector.load %arg5[%c0_7, %c0_8] : memref<1x128xf32, #tpu.memory_space<vmem>>, vector<1x128xf32>
    %c0_9 = arith.constant 0 : index
    %c0_10 = arith.constant 0 : index
    %6 = vector.load %arg6[%c0_9, %c0_10] : memref<128x128xf32, #tpu.memory_space<vmem>>, vector<128x128xf32>
    %cst = arith.constant 0.000000e+00 : f32
    %7 = vector.broadcast %cst : f32 to vector<9x128xf32>
    %c0_11 = arith.constant 0 : index
    %c0_12 = arith.constant 0 : index
    %8 = vector.load %arg10[%c0_11, %c0_12] : memref<50x128xf32, #tpu.memory_space<vmem>>, vector<9x128xf32>
    tpu.vector_store %arg10[%c0_11, %c0_12], %7 {strides = array<i32>} : memref<50x128xf32, #tpu.memory_space<vmem>>, vector<9x128xf32>,
    %c41 = arith.constant 41 : index
    %c0_13 = arith.constant 0 : index
    %9 = vector.load %arg10[%c41, %c0_13] : memref<50x128xf32, #tpu.memory_space<vmem>>, vector<9x128xf32>
    tpu.vector_store %arg10[%c41, %c0_13], %7 {strides = array<i32>} : memref<50x128xf32, #tpu.memory_space<vmem>>, vector<9x128xf32>,
    %c9 = arith.constant 9 : index
    %c0_14 = arith.constant 0 : index
    %10 = vector.load %arg10[%c9, %c0_14] : memref<50x128xf32, #tpu.memory_space<vmem>>, vector<32x128xf32>
    tpu.vector_store %arg10[%c9, %c0_14], %1 {strides = array<i32>} : memref<50x128xf32, #tpu.memory_space<vmem>>, vector<32x128xf32>,
    %c0_15 = arith.constant 0 : index
    %c0_16 = arith.constant 0 : index
    %11 = vector.load %arg10[%c0_15, %c0_16] : memref<50x128xf32, #tpu.memory_space<vmem>>, vector<48x128xf32>
    %12 = vector.broadcast %2 : vector<48x1xf32> to vector<48x128xf32>
    %13 = arith.mulf %11, %12 : vector<48x128xf32>
    %14 = arith.truncf %13 : vector<48x128xf32> to vector<48x128xbf16>
    %c1_17 = arith.constant 1 : index
    %c0_18 = arith.constant 0 : index
    %15 = vector.load %arg10[%c1_17, %c0_18] : memref<50x128xf32, #tpu.memory_space<vmem>>, vector<48x128xf32>
    %16 = arith.truncf %15 : vector<48x128xf32> to vector<48x128xbf16>
    %c2 = arith.constant 2 : index
    %c0_19 = arith.constant 0 : index
    %17 = vector.load %arg10[%c2, %c0_19] : memref<50x128xf32, #tpu.memory_space<vmem>>, vector<48x128xf32>
    %18 = vector.broadcast %3 : vector<48x1xf32> to vector<48x128xf32>
    %19 = arith.mulf %17, %18 : vector<48x128xf32>
    %20 = arith.truncf %19 : vector<48x128xf32> to vector<48x128xbf16>
    %21 = tpu.concatenate %14, %16, %20 in 1 : vector<48x128xbf16>, vector<48x128xbf16>, vector<48x128xbf16> -> vector<48x384xbf16>
    %22 = vector.extract_strided_slice %21 {offsets = [0, 0], sizes = [32, 384], strides = [1, 1]} : vector<48x384xbf16> to vector<32x384xbf16>
    %23 = vector.extract_strided_slice %21 {offsets = [8, 0], sizes = [32, 384], strides = [1, 1]} : vector<48x384xbf16> to vector<32x384xbf16>
    %24 = vector.extract_strided_slice %21 {offsets = [16, 0], sizes = [32, 384], strides = [1, 1]} : vector<48x384xbf16> to vector<32x384xbf16>
    %25 = tpu.concatenate %22, %23, %24 in 1 : vector<32x384xbf16>, vector<32x384xbf16>, vector<32x384xbf16> -> vector<32x1152xbf16>
    %c0_20 = arith.constant 0 : index
    %c0_21 = arith.constant 0 : index
    %26 = vector.load %arg2[%c0_20, %c0_21] : memref<1152x128xbf16, #tpu.memory_space<vmem>>, vector<1152x128xbf16>
    %cst_22 = arith.constant dense<0.000000e+00> : vector<32x128xf32>
    %27 = tpu.matmul %25, %26, %cst_22 {dimension_numbers = #tpu.dot_dimension_numbers<[1], [0], [0], [1], [0, 0, 1, 1], [], []>} : vector<32x1152xbf16>, vector<1152x128xbf16>, vector<32x128xf32> -> vector<32x128xf32>
    %cst_23 = arith.constant dense<0.000000e+00> : vector<128xf32>
    %28 = vector.multi_reduction <add>, %27, %cst_23 [0] : vector<32x128xf32> to vector<128xf32>
    %29 = vector.shape_cast %28 : vector<128xf32> to vector<1x128xf32>
    %cst_24 = arith.constant dense<0.000000e+00> : vector<1x128xf32>
    %30 = tpu.matmul %29, %6, %cst_24 {dimension_numbers = #tpu.dot_dimension_numbers<[1], [0], [0], [1], [0, 0, 1, 1], [], []>} : vector<1x128xf32>, vector<128x128xf32>, vector<1x128xf32> -> vector<1x128xf32>
    %31 = vector.broadcast %30 : vector<1x128xf32> to vector<32x128xf32>
    %32 = arith.subf %27, %31 : vector<32x128xf32>
    %33 = arith.mulf %32, %32 : vector<32x128xf32>
    %cst_25 = arith.constant dense<0.000000e+00> : vector<128xf32>
    %34 = vector.multi_reduction <add>, %33, %cst_25 [0] : vector<32x128xf32> to vector<128xf32>
    %35 = vector.shape_cast %34 : vector<128xf32> to vector<1x128xf32>
    %cst_26 = arith.constant dense<0.000000e+00> : vector<1x128xf32>
    %36 = tpu.matmul %35, %6, %cst_26 {dimension_numbers = #tpu.dot_dimension_numbers<[1], [0], [0], [1], [0, 0, 1, 1], [], []>} : vector<1x128xf32>, vector<128x128xf32>, vector<1x128xf32> -> vector<1x128xf32>
    %cst_27 = arith.constant 9.99999974E-6 : f32
    %37 = vector.broadcast %cst_27 : f32 to vector<1x128xf32>
    %38 = arith.addf %36, %37 : vector<1x128xf32>
    %39 = math.rsqrt %38 : vector<1x128xf32>
    %40 = vector.broadcast %39 : vector<1x128xf32> to vector<32x128xf32>
    %41 = arith.mulf %32, %40 : vector<32x128xf32>
    %42 = vector.broadcast %4 : vector<1x128xf32> to vector<32x128xf32>
    %43 = arith.mulf %41, %42 : vector<32x128xf32>
    %44 = vector.broadcast %5 : vector<1x128xf32> to vector<32x128xf32>
    %45 = arith.addf %43, %44 : vector<32x128xf32>
    %cst_28 = arith.constant 0.000000e+00 : f32
    %46 = vector.broadcast %cst_28 : f32 to vector<32x128xf32>
    %47 = arith.subf %46, %45 : vector<32x128xf32>
    %48 = math.exp %47 : vector<32x128xf32>
    %cst_29 = arith.constant 1.000000e+00 : f32
    %49 = vector.broadcast %cst_29 : f32 to vector<32x128xf32>
    %50 = arith.addf %49, %48 : vector<32x128xf32>
    %51 = tpu.reciprocal %50 {approx = true} : vector<32x128xf32> -> vector<32x128xf32>
    %52 = arith.mulf %45, %51 : vector<32x128xf32>
    %cst_30 = arith.constant 0.000000e+00 : f32
    %53 = vector.broadcast %cst_30 : f32 to vector<9x128xf32>
    %c0_31 = arith.constant 0 : index
    %c0_32 = arith.constant 0 : index
    %54 = vector.load %arg11[%c0_31, %c0_32] : memref<50x128xf32, #tpu.memory_space<vmem>>, vector<9x128xf32>
    tpu.vector_store %arg11[%c0_31, %c0_32], %53 {strides = array<i32>} : memref<50x128xf32, #tpu.memory_space<vmem>>, vector<9x128xf32>,
    %c41_33 = arith.constant 41 : index
    %c0_34 = arith.constant 0 : index
    %55 = vector.load %arg11[%c41_33, %c0_34] : memref<50x128xf32, #tpu.memory_space<vmem>>, vector<9x128xf32>
    tpu.vector_store %arg11[%c41_33, %c0_34], %53 {strides = array<i32>} : memref<50x128xf32, #tpu.memory_space<vmem>>, vector<9x128xf32>,
    %c9_35 = arith.constant 9 : index
    %c0_36 = arith.constant 0 : index
    %56 = vector.load %arg11[%c9_35, %c0_36] : memref<50x128xf32, #tpu.memory_space<vmem>>, vector<32x128xf32>
    tpu.vector_store %arg11[%c9_35, %c0_36], %52 {strides = array<i32>} : memref<50x128xf32, #tpu.memory_space<vmem>>, vector<32x128xf32>,
    %c0_37 = arith.constant 0 : index
    %c0_38 = arith.constant 0 : index
    %57 = vector.load %arg11[%c0_37, %c0_38] : memref<50x128xf32, #tpu.memory_space<vmem>>, vector<48x128xf32>
    %58 = vector.broadcast %2 : vector<48x1xf32> to vector<48x128xf32>
    %59 = arith.mulf %57, %58 : vector<48x128xf32>
    %60 = arith.truncf %59 : vector<48x128xf32> to vector<48x128xbf16>
    %c1_39 = arith.constant 1 : index
    %c0_40 = arith.constant 0 : index
    %61 = vector.load %arg11[%c1_39, %c0_40] : memref<50x128xf32, #tpu.memory_space<vmem>>, vector<48x128xf32>
    %62 = arith.truncf %61 : vector<48x128xf32> to vector<48x128xbf16>
    %c2_41 = arith.constant 2 : index
    %c0_42 = arith.constant 0 : index
    %63 = vector.load %arg11[%c2_41, %c0_42] : memref<50x128xf32, #tpu.memory_space<vmem>>, vector<48x128xf32>
    %64 = vector.broadcast %3 : vector<48x1xf32> to vector<48x128xf32>
    %65 = arith.mulf %63, %64 : vector<48x128xf32>
    %66 = arith.truncf %65 : vector<48x128xf32> to vector<48x128xbf16>
    %67 = tpu.concatenate %60, %62, %66 in 1 : vector<48x128xbf16>, vector<48x128xbf16>, vector<48x128xbf16> -> vector<48x384xbf16>
    %68 = vector.extract_strided_slice %67 {offsets = [0, 0], sizes = [32, 384], strides = [1, 1]} : vector<48x384xbf16> to vector<32x384xbf16>
    %69 = vector.extract_strided_slice %67 {offsets = [8, 0], sizes = [32, 384], strides = [1, 1]} : vector<48x384xbf16> to vector<32x384xbf16>
    %70 = vector.extract_strided_slice %67 {offsets = [16, 0], sizes = [32, 384], strides = [1, 1]} : vector<48x384xbf16> to vector<32x384xbf16>
    %71 = tpu.concatenate %68, %69, %70 in 1 : vector<32x384xbf16>, vector<32x384xbf16>, vector<32x384xbf16> -> vector<32x1152xbf16>
    %c0_43 = arith.constant 0 : index
    %c0_44 = arith.constant 0 : index
    %72 = vector.load %arg3[%c0_43, %c0_44] : memref<1152x128xbf16, #tpu.memory_space<vmem>>, vector<1152x128xbf16>
    %cst_45 = arith.constant dense<0.000000e+00> : vector<32x128xf32>
    %73 = tpu.matmul %71, %72, %cst_45 {dimension_numbers = #tpu.dot_dimension_numbers<[1], [0], [0], [1], [0, 0, 1, 1], [], []>} : vector<32x1152xbf16>, vector<1152x128xbf16>, vector<32x128xf32> -> vector<32x128xf32>
    %cst_46 = arith.constant dense<0.000000e+00> : vector<128xf32>
    %74 = vector.multi_reduction <add>, %73, %cst_46 [0] : vector<32x128xf32> to vector<128xf32>
    %75 = vector.shape_cast %74 : vector<128xf32> to vector<1x128xf32>
    %cst_47 = arith.constant dense<0.000000e+00> : vector<1x128xf32>
    %76 = tpu.matmul %75, %6, %cst_47 {dimension_numbers = #tpu.dot_dimension_numbers<[1], [0], [0], [1], [0, 0, 1, 1], [], []>} : vector<1x128xf32>, vector<128x128xf32>, vector<1x128xf32> -> vector<1x128xf32>
    %77 = vector.broadcast %76 : vector<1x128xf32> to vector<32x128xf32>
    %78 = arith.subf %73, %77 : vector<32x128xf32>
    %79 = arith.mulf %78, %78 : vector<32x128xf32>
    %cst_48 = arith.constant dense<0.000000e+00> : vector<128xf32>
    %80 = vector.multi_reduction <add>, %79, %cst_48 [0] : vector<32x128xf32> to vector<128xf32>
    %81 = vector.shape_cast %80 : vector<128xf32> to vector<1x128xf32>
    %cst_49 = arith.constant dense<0.000000e+00> : vector<1x128xf32>
    %82 = tpu.matmul %81, %6, %cst_49 {dimension_numbers = #tpu.dot_dimension_numbers<[1], [0], [0], [1], [0, 0, 1, 1], [], []>} : vector<1x128xf32>, vector<128x128xf32>, vector<1x128xf32> -> vector<1x128xf32>
    %cst_50 = arith.constant 9.99999974E-6 : f32
    %83 = vector.broadcast %cst_50 : f32 to vector<1x128xf32>
    %84 = arith.addf %82, %83 : vector<1x128xf32>
    %85 = math.rsqrt %84 : vector<1x128xf32>
    %86 = vector.broadcast %85 : vector<1x128xf32> to vector<32x128xf32>
    %87 = arith.mulf %78, %86 : vector<32x128xf32>
    %88 = vector.broadcast %4 : vector<1x128xf32> to vector<32x128xf32>
    %89 = arith.mulf %87, %88 : vector<32x128xf32>
    %90 = vector.broadcast %5 : vector<1x128xf32> to vector<32x128xf32>
    %91 = arith.addf %89, %90 : vector<32x128xf32>
    %cst_51 = arith.constant 0.000000e+00 : f32
    %92 = vector.broadcast %cst_51 : f32 to vector<32x128xf32>
    %93 = arith.subf %92, %91 : vector<32x128xf32>
    %94 = math.exp %93 : vector<32x128xf32>
    %cst_52 = arith.constant 1.000000e+00 : f32
    %95 = vector.broadcast %cst_52 : f32 to vector<32x128xf32>
    %96 = arith.addf %95, %94 : vector<32x128xf32>
    %97 = tpu.reciprocal %96 {approx = true} : vector<32x128xf32> -> vector<32x128xf32>
    %98 = arith.mulf %91, %97 : vector<32x128xf32>
    %c0_53 = arith.constant 0 : index
    %c0_54 = arith.constant 0 : index
    %99 = vector.load %arg8[%c0_53, %c0_54] : memref<128x128xf32, #tpu.memory_space<vmem>>, vector<128x128xf32>
    %cst_55 = arith.constant dense<0.000000e+00> : vector<32x128xf32>
    %100 = tpu.matmul %1, %99, %cst_55 {dimension_numbers = #tpu.dot_dimension_numbers<[1], [0], [0], [1], [0, 0, 1, 1], [], []>} : vector<32x128xf32>, vector<128x128xf32>, vector<32x128xf32> -> vector<32x128xf32>
    %101 = arith.addf %98, %100 : vector<32x128xf32>
    %c0_56 = arith.constant 0 : index
    %c0_57 = arith.constant 0 : index
    %c0_58 = arith.constant 0 : index
    %102 = vector.load %arg9[%c0_56, %c0_57, %c0_58] : memref<1x32x128xf32, #tpu.memory_space<vmem>>, vector<1x32x128xf32>
    %103 = vector.shape_cast %102 : vector<1x32x128xf32> to vector<32x128xf32>
    %104 = vector.shape_cast %101 : vector<32x128xf32> to vector<1x32x128xf32>
    tpu.vector_store %arg9[%c0_56, %c0_57, %c0_58], %104 {strides = array<i32>} : memref<1x32x128xf32, #tpu.memory_space<vmem>>, vector<1x32x128xf32>,
    return
  }
  func.func @transform_0(%arg0: i32) -> (i32, i32, i32) {
    %c0_i32 = arith.constant 0 : i32
    %c0_i32_0 = arith.constant 0 : i32
    %c0_i32_1 = arith.constant 0 : i32
    return %arg0, %c0_i32, %c0_i32_0 : i32, i32, i32
  }
  func.func @transform_1(%arg0: i32) -> (i32, i32) {
    %c0_i32 = arith.constant 0 : i32
    %c0_i32_0 = arith.constant 0 : i32
    %c0_i32_1 = arith.constant 0 : i32
    return %c0_i32, %c0_i32_0 : i32, i32
  }
  func.func @transform_2(%arg0: i32) -> (i32, i32) {
    %c0_i32 = arith.constant 0 : i32
    %c0_i32_0 = arith.constant 0 : i32
    %c0_i32_1 = arith.constant 0 : i32
    return %c0_i32, %c0_i32_0 : i32, i32
  }
  func.func @transform_3(%arg0: i32) -> (i32, i32) {
    %c0_i32 = arith.constant 0 : i32
    %c0_i32_0 = arith.constant 0 : i32
    %c0_i32_1 = arith.constant 0 : i32
    return %c0_i32, %c0_i32_0 : i32, i32
  }
  func.func @transform_4(%arg0: i32) -> (i32, i32) {
    %c0_i32 = arith.constant 0 : i32
    %c0_i32_0 = arith.constant 0 : i32
    %c0_i32_1 = arith.constant 0 : i32
    return %c0_i32, %c0_i32_0 : i32, i32
  }
  func.func @transform_5(%arg0: i32) -> (i32, i32) {
    %c0_i32 = arith.constant 0 : i32
    %c0_i32_0 = arith.constant 0 : i32
    %c0_i32_1 = arith.constant 0 : i32
    return %c0_i32, %c0_i32_0 : i32, i32
  }
  func.func @transform_6(%arg0: i32) -> (i32, i32) {
    %c0_i32 = arith.constant 0 : i32
    %c0_i32_0 = arith.constant 0 : i32
    %c0_i32_1 = arith.constant 0 : i32
    return %c0_i32, %c0_i32_0 : i32, i32
  }
  func.func @transform_7(%arg0: i32) -> (i32, i32) {
    %c0_i32 = arith.constant 0 : i32
    %c0_i32_0 = arith.constant 0 : i32
    %c0_i32_1 = arith.constant 0 : i32
    return %c0_i32, %c0_i32_0 : i32, i32
  }
  func.func @transform_8(%arg0: i32) -> (i32, i32, i32) {
    %c0_i32 = arith.constant 0 : i32
    %c0_i32_0 = arith.constant 0 : i32
    %c0_i32_1 = arith.constant 0 : i32
    return %arg0, %c0_i32, %c0_i32_0 : i32, i32, i32
  }
}

</mosaic_0001>

<llo_original>
// kernel: tpu_custom_call.1
$region0: #{tpu_custom_call.1}
  #allocation0 [shape = 'u32[]', space=smem, size = 0x4, offset = 0x4, fixed_abs, tag = 'smem constant byte address 0x4 - core index']
  #allocation1 [shape = 'u32[72,128]{1,0:T(1,128)}', space=vmem, size = 0x9000, scoped, tag = 'internal scratch']
  #allocation2 [shape = 'f32[50,128]{1,0:T(8,128)}', space=vmem, size = 0x7000, scoped, tag = 'scratch operand']
  #allocation3 [shape = 'f32[50,128]{1,0:T(8,128)}', space=vmem, size = 0x7000, scoped, tag = 'scratch operand']
  %s0 = inlined_call_operand.hbm [shape: f32[2,32,128], index: 0, kind: input, shape index: {}]
  %s1 = inlined_call_operand.hbm [shape: bf16[1152,128], index: 1, kind: input, shape index: {}]
  %s2 = inlined_call_operand.hbm [shape: bf16[1152,128], index: 2, kind: input, shape index: {}]
  %s3 = inlined_call_operand.vmem [shape: f32[1,128], index: 3, kind: input, shape index: {}]
  %s4 = inlined_call_operand.vmem [shape: f32[1,128], index: 4, kind: input, shape index: {}]
  %s5 = inlined_call_operand.hbm [shape: f32[128,128], index: 5, kind: input, shape index: {}]
  %s6 = inlined_call_operand.vmem [shape: f32[48,2], index: 6, kind: input, shape index: {}]
  %s7 = inlined_call_operand.hbm [shape: f32[128,128], index: 7, kind: input, shape index: {}]
  %s8 = inlined_call_operand.hbm [shape: f32[2,32,128], index: 8, kind: output, shape index: {}]
  %s9 = sld [smem:[#allocation0]]
  $region85: #{tpu_custom_call.1} parent=0
    _
  %s11 = ssub.s32 1, %s9
  %s12 = scalar_select 0, %s11, %s9
  $region1: #{tpu_custom_call.1} parent=0
    #allocation4 [shape = 'u8[32768]{0}', space=vmem, size = 0x8000, scoped, tag = 'input window, operand 0']
    #allocation5 [shape = 's32[2]{0}', space=sflag, size = 0x8, scoped, tag = 'scoped memory for tpu_custom_call.1']
    #allocation6 [shape = 's32[2]{0}', space=sflag, size = 0x8, scoped, tag = 'scoped memory for tpu_custom_call.1']
    #allocation7 [shape = 'u8[294912]{0}', space=vmem, size = 0x48000, scoped, tag = 'input window, operand 1, single buffered']
    #allocation8 [shape = 's32[1]{0}', space=sflag, size = 0x4, scoped, tag = 'scoped memory for tpu_custom_call.1']
    #allocation9 [shape = 'u8[294912]{0}', space=vmem, size = 0x48000, scoped, tag = 'input window, operand 2, single buffered']
    #allocation10 [shape = 'u8[65536]{0}', space=vmem, size = 0x10000, scoped, tag = 'input window, operand 5, single buffered']
    #allocation11 [shape = 's32[1]{0}', space=sflag, size = 0x4, scoped, tag = 'scoped memory for tpu_custom_call.1']
    #allocation12 [shape = 'u8[65536]{0}', space=vmem, size = 0x10000, scoped, tag = 'input window, operand 7, single buffered']
    #allocation13 [shape = 'u8[32768]{0}', space=vmem, size = 0x8000, scoped, tag = 'output window, operand 0']
    %13 = vsyncpa [#allocation5], 0
    %s14 = scalar_lea.sflag [#allocation5], 1
    %15 = vsyncpa %s14, 0
    %16 = vsyncpa [#allocation8], 0
    %17 = vsyncpa [#allocation11], 0
    %18 = vsyncpa [#allocation6], 0
    %s19 = scalar_lea.sflag [#allocation6], 1
    %20 = vsyncpa %s19, 0
    loop: start=0, step=1, limit=4
    $region2: #{tpu_custom_call.1} parent=1 // loop_pre_header
      _
    $region3: #{tpu_custom_call.1} parent=1 // loop_header
      %s22 = sphi 0, %s26
      %p23 = scmp.ge.s32.totalorder %s22, 4
      %s32 = sphi 0, %s34
      %s35 = sphi 0, %s32
      %s36 = sphi 0, %s35
      %s52 = sphi 0, %s36
      %s56 = sphi 0, %s56
      %s58 = sphi 0, %s56
      %s59 = sphi 0, %s58
      %s73 = sphi 0, %s59
      %s77 = sphi 0, %s77
      %s79 = sphi 0, %s77
      %s80 = sphi 0, %s79
      %s94 = sphi 0, %s80
      %s98 = sphi 0, %s98
      %s100 = sphi 0, %s98
      %s101 = sphi 0, %s100
      %s115 = sphi 0, %s101
      %s119 = sphi 0, %s119
      %s121 = sphi 0, %s119
      %s122 = sphi 0, %s121
      %s136 = sphi 0, %s122
      %s140 = sphi 0, %s140
      %s142 = sphi 0, %s140
      %s143 = sphi 0, %s142
      %s157 = sphi 0, %s143
      %s161 = sphi 0, %s161
      %s163 = sphi 0, %s161
      %s164 = sphi 0, %s163
      %s178 = sphi 0, %s164
      %s182 = sphi 0, %s182
      %s184 = sphi 0, %s182
      %s185 = sphi 0, %s184
      %s199 = sphi 0, %s185
      %s205 = sphi 0, %s207
      %s208 = sphi 0, %s205
      %s209 = sphi 0, %s208
      %s225 = sphi 0, %s209
    $region4: #{tpu_custom_call.1} parent=1 // loop_header_branch
      %25 = sbr.rel (%p23) target = $region8
    $region5: #{tpu_custom_call.1} parent=1 // loop_body
      %s27 = ssub.s32 %s22, 1
      %s28 = ssub.s32 %s22, 2
      %s29 = sadd.s32 %s22, 1
      %s30 = ssub.s32 %s22, %s29
      %p31 = scmp.eq.s32.totalorder %s30, 0
      %s33 = sadd.s32 %s32, 1
      %s34 = scalar_select %p31, %s32, %s33
      %p37 = pneg %p31
      %p38 = scmp.eq.s32.totalorder %s22, 1
      %p39 = por %p37, %p38
      %p40 = scmp.ne.s32.totalorder %s32, %s35
      %p41 = scmp.eq.s32.totalorder %s22, 0
      %p42 = por %p40, %p41
      %p43 = scmp.ne.s32.totalorder %s32, %s35
      %p44 = scmp.eq.s32.totalorder %s27, 1
      %p45 = por %p43, %p44
      %p46 = scmp.ne.s32.totalorder %s35, %s36
      %p47 = scmp.eq.s32.totalorder %s27, 0
      %p48 = por %p46, %p47
      %p49 = scmp.ne.s32.totalorder %s35, %s36
      %p50 = scmp.eq.s32.totalorder %s28, 1
      %p51 = por %p49, %p50
      %p53 = scmp.ne.s32.totalorder %s36, %s52
      %p54 = scmp.eq.s32.totalorder %s28, 0
      %p55 = por %p53, %p54
      %s57 = sadd.s32 %s56, 1
      %p60 = scmp.eq.s32.totalorder %s22, 1
      %p61 = scmp.ne.s32.totalorder %s56, %s58
      %p62 = scmp.eq.s32.totalorder %s22, 0
      %p63 = por %p61, %p62
      %p64 = scmp.ne.s32.totalorder %s56, %s58
      %p65 = scmp.eq.s32.totalorder %s27, 1
      %p66 = por %p64, %p65
      %p67 = scmp.ne.s32.totalorder %s58, %s59
      %p68 = scmp.eq.s32.totalorder %s27, 0
      %p69 = por %p67, %p68
      %p70 = scmp.ne.s32.totalorder %s58, %s59
      %p71 = scmp.eq.s32.totalorder %s28, 1
      %p72 = por %p70, %p71
      %p74 = scmp.ne.s32.totalorder %s59, %s73
      %p75 = scmp.eq.s32.totalorder %s28, 0
      %p76 = por %p74, %p75
      %s78 = sadd.s32 %s77, 1
      %p81 = scmp.eq.s32.totalorder %s22, 1
      %p82 = scmp.ne.s32.totalorder %s77, %s79
      %p83 = scmp.eq.s32.totalorder %s22, 0
      %p84 = por %p82, %p83
      %p85 = scmp.ne.s32.totalorder %s77, %s79
      %p86 = scmp.eq.s32.totalorder %s27, 1
      %p87 = por %p85, %p86
      %p88 = scmp.ne.s32.totalorder %s79, %s80
      %p89 = scmp.eq.s32.totalorder %s27, 0
      %p90 = por %p88, %p89
      %p91 = scmp.ne.s32.totalorder %s79, %s80
      %p92 = scmp.eq.s32.totalorder %s28, 1
      %p93 = por %p91, %p92
      %p95 = scmp.ne.s32.totalorder %s80, %s94
      %p96 = scmp.eq.s32.totalorder %s28, 0
      %p97 = por %p95, %p96
      %s99 = sadd.s32 %s98, 1
      %p102 = scmp.eq.s32.totalorder %s22, 1
      %p103 = scmp.ne.s32.totalorder %s98, %s100
      %p104 = scmp.eq.s32.totalorder %s22, 0
      %p105 = por %p103, %p104
      %p106 = scmp.ne.s32.totalorder %s98, %s100
      %p107 = scmp.eq.s32.totalorder %s27, 1
      %p108 = por %p106, %p107
      %p109 = scmp.ne.s32.totalorder %s100, %s101
      %p110 = scmp.eq.s32.totalorder %s27, 0
      %p111 = por %p109, %p110
      %p112 = scmp.ne.s32.totalorder %s100, %s101
      %p113 = scmp.eq.s32.totalorder %s28, 1
      %p114 = por %p112, %p113
      %p116 = scmp.ne.s32.totalorder %s101, %s115
      %p117 = scmp.eq.s32.totalorder %s28, 0
      %p118 = por %p116, %p117
      %s120 = sadd.s32 %s119, 1
      %p123 = scmp.eq.s32.totalorder %s22, 1
      %p124 = scmp.ne.s32.totalorder %s119, %s121
      %p125 = scmp.eq.s32.totalorder %s22, 0
      %p126 = por %p124, %p125
      %p127 = scmp.ne.s32.totalorder %s119, %s121
      %p128 = scmp.eq.s32.totalorder %s27, 1
      %p129 = por %p127, %p128
      %p130 = scmp.ne.s32.totalorder %s121, %s122
      %p131 = scmp.eq.s32.totalorder %s27, 0
      %p132 = por %p130, %p131
      %p133 = scmp.ne.s32.totalorder %s121, %s122
      %p134 = scmp.eq.s32.totalorder %s28, 1
      %p135 = por %p133, %p134
      %p137 = scmp.ne.s32.totalorder %s122, %s136
      %p138 = scmp.eq.s32.totalorder %s28, 0
      %p139 = por %p137, %p138
      %s141 = sadd.s32 %s140, 1
      %p144 = scmp.eq.s32.totalorder %s22, 1
      %p145 = scmp.ne.s32.totalorder %s140, %s142
      %p146 = scmp.eq.s32.totalorder %s22, 0
      %p147 = por %p145, %p146
      %p148 = scmp.ne.s32.totalorder %s140, %s142
      %p149 = scmp.eq.s32.totalorder %s27, 1
      %p150 = por %p148, %p149
      %p151 = scmp.ne.s32.totalorder %s142, %s143
      %p152 = scmp.eq.s32.totalorder %s27, 0
      %p153 = por %p151, %p152
      %p154 = scmp.ne.s32.totalorder %s142, %s143
      %p155 = scmp.eq.s32.totalorder %s28, 1
      %p156 = por %p154, %p155
      %p158 = scmp.ne.s32.totalorder %s143, %s157
      %p159 = scmp.eq.s32.totalorder %s28, 0
      %p160 = por %p158, %p159
      %s162 = sadd.s32 %s161, 1
      %p165 = scmp.eq.s32.totalorder %s22, 1
      %p166 = scmp.ne.s32.totalorder %s161, %s163
      %p167 = scmp.eq.s32.totalorder %s22, 0
      %p168 = por %p166, %p167
      %p169 = scmp.ne.s32.totalorder %s161, %s163
      %p170 = scmp.eq.s32.totalorder %s27, 1
      %p171 = por %p169, %p170
      %p172 = scmp.ne.s32.totalorder %s163, %s164
      %p173 = scmp.eq.s32.totalorder %s27, 0
      %p174 = por %p172, %p173
      %p175 = scmp.ne.s32.totalorder %s163, %s164
      %p176 = scmp.eq.s32.totalorder %s28, 1
      %p177 = por %p175, %p176
      %p179 = scmp.ne.s32.totalorder %s164, %s178
      %p180 = scmp.eq.s32.totalorder %s28, 0
      %p181 = por %p179, %p180
      %s183 = sadd.s32 %s182, 1
      %p186 = scmp.eq.s32.totalorder %s22, 1
      %p187 = scmp.ne.s32.totalorder %s182, %s184
      %p188 = scmp.eq.s32.totalorder %s22, 0
      %p189 = por %p187, %p188
      %p190 = scmp.ne.s32.totalorder %s182, %s184
      %p191 = scmp.eq.s32.totalorder %s27, 1
      %p192 = por %p190, %p191
      %p193 = scmp.ne.s32.totalorder %s184, %s185
      %p194 = scmp.eq.s32.totalorder %s27, 0
      %p195 = por %p193, %p194
      %p196 = scmp.ne.s32.totalorder %s184, %s185
      %p197 = scmp.eq.s32.totalorder %s28, 1
      %p198 = por %p196, %p197
      %p200 = scmp.ne.s32.totalorder %s185, %s199
      %p201 = scmp.eq.s32.totalorder %s28, 0
      %p202 = por %p200, %p201
      %s203 = ssub.s32 %s22, %s29
      %p204 = scmp.eq.s32.totalorder %s203, 0
      %s206 = sadd.s32 %s205, 1
      %s207 = scalar_select %p204, %s205, %s206
      %p210 = pneg %p204
      %p211 = scmp.eq.s32.totalorder %s22, 1
      %p212 = por %p210, %p211
      %p213 = scmp.ne.s32.totalorder %s205, %s208
      %p214 = scmp.eq.s32.totalorder %s22, 0
      %p215 = por %p213, %p214
      %p216 = scmp.ne.s32.totalorder %s205, %s208
      %p217 = scmp.eq.s32.totalorder %s27, 1
      %p218 = por %p216, %p217
      %p219 = scmp.ne.s32.totalorder %s208, %s209
      %p220 = scmp.eq.s32.totalorder %s27, 0
      %p221 = por %p219, %p220
      %p222 = scmp.ne.s32.totalorder %s208, %s209
      %p223 = scmp.eq.s32.totalorder %s28, 1
      %p224 = por %p222, %p223
      %p226 = scmp.ne.s32.totalorder %s209, %s225
      %p227 = scmp.eq.s32.totalorder %s28, 0
      %p228 = por %p226, %p227
      %p229 = scmp.le.s32.totalorder 1, %s22
      %p230 = scmp.lt.s32.totalorder %s22, 3
      %p231 = pnand %p229, %p230
      %p232 = pneg %p231
      // Predicated region
      $region9: #{tpu_custom_call.1} parent=5 // pred_check
        _
      $region10: #{tpu_custom_call.1} parent=5 // pred_check_branch
        %234 = sbr.rel (%p231) target = $region12
      $region11: #{tpu_custom_call.1} parent=5 // pred_region
        %s235 = ssub.s32 %s22, 1
        // Predicated region
        $region13: #{tpu_custom_call.1} parent=11 // pred_check
          %p236 = pneg %p69
        $region14: #{tpu_custom_call.1} parent=11 // pred_check_branch
          %238 = sbr.rel (%p236) target = $region16
        $region15: #{tpu_custom_call.1} parent=11 // pred_region
          %240 = vsyncadd [#allocation8], 0
          %s241 = sshll.u32 %s1, 4
          %s242 = int_to_ptr.hbm [resolvable:$true] %s241
          %s243 = sshll.u32 [#allocation7], 4
          %s244 = int_to_ptr.vmem [resolvable:$true] %s243
          %249 = dma.hbm_to_vmem [thread:$0]  %s242, 9216, %s244, [#allocation8], 64, 64, 4
        $region16: #{tpu_custom_call.1} parent=11 // pred_fallthru
          _
        // Predicated region
        $region17: #{tpu_custom_call.1} parent=11 // pred_check
          %p250 = pneg %p90
        $region18: #{tpu_custom_call.1} parent=11 // pred_check_branch
          %252 = sbr.rel (%p250) target = $region20
        $region19: #{tpu_custom_call.1} parent=11 // pred_region
          %254 = vsyncadd [#allocation8], 0
          %s255 = sshll.u32 %s2, 4
          %s256 = int_to_ptr.hbm [resolvable:$true] %s255
          %s257 = sshll.u32 [#allocation9], 4
          %s258 = int_to_ptr.vmem [resolvable:$true] %s257
          %263 = dma.hbm_to_vmem [thread:$0]  %s256, 9216, %s258, [#allocation8], 64, 64, 4
        $region20: #{tpu_custom_call.1} parent=11 // pred_fallthru
          _
        // Predicated region
        $region21: #{tpu_custom_call.1} parent=11 // pred_check
          %p264 = pneg %p111
        $region22: #{tpu_custom_call.1} parent=11 // pred_check_branch
          %266 = sbr.rel (%p264) target = $region24
        $region23: #{tpu_custom_call.1} parent=11 // pred_region
          _
        $region24: #{tpu_custom_call.1} parent=11 // pred_fallthru
          _
        // Predicated region
        $region25: #{tpu_custom_call.1} parent=11 // pred_check
          %p267 = pneg %p132
        $region26: #{tpu_custom_call.1} parent=11 // pred_check_branch
          %269 = sbr.rel (%p267) target = $region28
        $region27: #{tpu_custom_call.1} parent=11 // pred_region
          _
        $region28: #{tpu_custom_call.1} parent=11 // pred_fallthru
          _
        // Predicated region
        $region29: #{tpu_custom_call.1} parent=11 // pred_check
          %p270 = pneg %p153
        $region30: #{tpu_custom_call.1} parent=11 // pred_check_branch
          %272 = sbr.rel (%p270) target = $region32
        $region31: #{tpu_custom_call.1} parent=11 // pred_region
          %274 = vsyncadd [#allocation11], 0
          %s275 = sshll.u32 %s5, 4
          %s276 = int_to_ptr.hbm [resolvable:$true] %s275
          %s277 = sshll.u32 [#allocation10], 4
          %s278 = int_to_ptr.vmem [resolvable:$true] %s277
          %283 = dma.hbm_to_vmem [thread:$0]  %s276, 2048, %s278, [#allocation11], 128, 128, 8
        $region32: #{tpu_custom_call.1} parent=11 // pred_fallthru
          _
        // Predicated region
        $region33: #{tpu_custom_call.1} parent=11 // pred_check
          %p284 = pneg %p174
        $region34: #{tpu_custom_call.1} parent=11 // pred_check_branch
          %286 = sbr.rel (%p284) target = $region36
        $region35: #{tpu_custom_call.1} parent=11 // pred_region
          _
        $region36: #{tpu_custom_call.1} parent=11 // pred_fallthru
          _
        // Predicated region
        $region37: #{tpu_custom_call.1} parent=11 // pred_check
          %p287 = pneg %p195
        $region38: #{tpu_custom_call.1} parent=11 // pred_check_branch
          %289 = sbr.rel (%p287) target = $region40
        $region39: #{tpu_custom_call.1} parent=11 // pred_region
          %291 = vsyncadd [#allocation11], 0
          %s292 = sshll.u32 %s7, 4
          %s293 = int_to_ptr.hbm [resolvable:$true] %s292
          %s294 = sshll.u32 [#allocation12], 4
          %s295 = int_to_ptr.vmem [resolvable:$true] %s294
          %300 = dma.hbm_to_vmem [thread:$0]  %s293, 2048, %s295, [#allocation11], 128, 128, 8
        $region40: #{tpu_custom_call.1} parent=11 // pred_fallthru
          _
      $region12: #{tpu_custom_call.1} parent=5 // pred_fallthru
        _
      %p301 = scmp.lt.s32.totalorder %s22, 2
      // Predicated region
      $region41: #{tpu_custom_call.1} parent=5 // pred_check
        %p302 = pneg %p301
      $region42: #{tpu_custom_call.1} parent=5 // pred_check_branch
        %304 = sbr.rel (%p302) target = $region44
      $region43: #{tpu_custom_call.1} parent=5 // pred_region
        // Predicated region
        $region45: #{tpu_custom_call.1} parent=43 // pred_check
          %p305 = pneg %p42
        $region46: #{tpu_custom_call.1} parent=43 // pred_check_branch
          %307 = sbr.rel (%p305) target = $region48
        $region47: #{tpu_custom_call.1} parent=43 // pred_region
          %s308 = sand.u32 %s32, 1
          %s309 = scalar_lea.sflag [#allocation5], %s308
          %s310 = sand.u32 %s32, 1
          %s311 = smul.addr %s310, 32
          %s312 = scalar_lea.vmem [#allocation4], %s311
          %314 = vsyncadd %s309, 0
          %s315 = smul.addr %s22, 4
          %s316 = smul.addr %s315, 8
          %s317 = scalar_lea.hbm %s0, %s316
          %s318 = sshll.u32 %s317, 4
          %s319 = int_to_ptr.hbm [resolvable:$true] %s318
          %s320 = sshll.u32 %s312, 4
          %s321 = int_to_ptr.vmem [resolvable:$true] %s320
          %326 = dma.hbm_to_vmem [thread:$0]  %s319, 512, %s321, %s309, 128, 128, 8
        $region48: #{tpu_custom_call.1} parent=43 // pred_fallthru
          _
      $region44: #{tpu_custom_call.1} parent=5 // pred_fallthru
        _
      %p327 = scmp.le.s32.totalorder 1, %s22
      %p328 = scmp.lt.s32.totalorder %s22, 3
      %p329 = pnand %p327, %p328
      %p330 = pneg %p329
      // Predicated region
      $region49: #{tpu_custom_call.1} parent=5 // pred_check
        _
      $region50: #{tpu_custom_call.1} parent=5 // pred_check_branch
        %332 = sbr.rel (%p329) target = $region52
      $region51: #{tpu_custom_call.1} parent=5 // pred_region
        %s333 = ssub.s32 %s22, 1
        %s334 = sand.u32 %s35, 1
        %s335 = scalar_lea.sflag [#allocation5], %s334
        %s336 = sand.u32 %s35, 1
        %s337 = smul.addr %s336, 32
        %s338 = scalar_lea.vmem [#allocation4], %s337
        // Predicated region
        $region53: #{tpu_custom_call.1} parent=51 // pred_check
          %p339 = pneg %p48
        $region54: #{tpu_custom_call.1} parent=51 // pred_check_branch
          %341 = sbr.rel (%p339) target = $region56
        $region55: #{tpu_custom_call.1} parent=51 // pred_region
          %343 = dma.done %s335, 512
        $region56: #{tpu_custom_call.1} parent=51 // pred_fallthru
          _
        // Predicated region
        $region57: #{tpu_custom_call.1} parent=51 // pred_check
          %p344 = pneg %p69
        $region58: #{tpu_custom_call.1} parent=51 // pred_check_branch
          %346 = sbr.rel (%p344) target = $region60
        $region59: #{tpu_custom_call.1} parent=51 // pred_region
          %348 = dma.done [#allocation8], 9216
        $region60: #{tpu_custom_call.1} parent=51 // pred_fallthru
          _
        // Predicated region
        $region61: #{tpu_custom_call.1} parent=51 // pred_check
          %p349 = pneg %p90
        $region62: #{tpu_custom_call.1} parent=51 // pred_check_branch
          %351 = sbr.rel (%p349) target = $region64
        $region63: #{tpu_custom_call.1} parent=51 // pred_region
          %353 = dma.done [#allocation8], 9216
        $region64: #{tpu_custom_call.1} parent=51 // pred_fallthru
          _
        // Predicated region
        $region65: #{tpu_custom_call.1} parent=51 // pred_check
          %p354 = pneg %p153
        $region66: #{tpu_custom_call.1} parent=51 // pred_check_branch
          %356 = sbr.rel (%p354) target = $region68
        $region67: #{tpu_custom_call.1} parent=51 // pred_region
          %358 = dma.done [#allocation11], 2048
        $region68: #{tpu_custom_call.1} parent=51 // pred_fallthru
          _
        // Predicated region
        $region69: #{tpu_custom_call.1} parent=51 // pred_check
          %p359 = pneg %p195
        $region70: #{tpu_custom_call.1} parent=51 // pred_check_branch
          %361 = sbr.rel (%p359) target = $region72
        $region71: #{tpu_custom_call.1} parent=51 // pred_region
          %363 = dma.done [#allocation11], 2048
        $region72: #{tpu_custom_call.1} parent=51 // pred_fallthru
          _
        %s364 = sand.u32 %s35, 1
        %s365 = scalar_lea.sflag [#allocation5], %s364
        %s366 = sand.u32 %s35, 1
        %s367 = smul.addr %s366, 32
        %s368 = scalar_lea.vmem [#allocation4], %s367
        %p369 = pneg %p48
        %p370 = pneg %p45
        %p371 = pneg %p69
        %p372 = pneg %p66
        %p373 = pneg %p90
        %p374 = pneg %p87
        %p375 = pneg %p111
        %p376 = pneg %p108
        %p377 = pneg %p132
        %p378 = pneg %p129
        %p379 = pneg %p153
        %p380 = pneg %p150
        %p381 = pneg %p174
        %p382 = pneg %p171
        %p383 = pneg %p195
        %p384 = pneg %p192
        %p385 = pneg %p221
        %p386 = pneg %p218
        %s387 = sand.u32 %s208, 1
        %s388 = scalar_lea.sflag [#allocation6], %s387
        %s389 = sand.u32 %s208, 1
        %s390 = smul.addr %s389, 32
        %s391 = scalar_lea.vmem [#allocation13], %s390
        %v392 = vld [vmem:[%s338] sm:$0xff]
        %v393 = vld [vmem:[%s338 + $0x8] sm:$0xff]
        %v394 = vld [vmem:[%s338 + $0x10] sm:$0xff]
        %v395 = vld [vmem:[%s338 + $0x18] sm:$0xff]
        %v396 = vld [vmem:[%s6] sm:$0xff]
        %v397 = vld [vmem:[%s6 + $0x8] sm:$0xff]
        %v398 = vld [vmem:[%s6 + $0x10] sm:$0xff]
        %v399 = vld [vmem:[%s6 + $0x18] sm:$0xff]
        %v400 = vld [vmem:[%s6 + $0x20] sm:$0xff]
        %v401 = vld [vmem:[%s6 + $0x28] sm:$0xff]
        %v402 = vld [vmem:[%s3] sm:$0x1]
        %v403 = vld [vmem:[%s4] sm:$0x1]
        %v404 = vld [vmem:[#allocation10] sm:$0xff]
        %v405 = vld [vmem:[#allocation10 + $0x8] sm:$0xff]
        %v406 = vld [vmem:[#allocation10 + $0x10] sm:$0xff]
        %v407 = vld [vmem:[#allocation10 + $0x18] sm:$0xff]
        %v408 = vld [vmem:[#allocation10 + $0x20] sm:$0xff]
        %v409 = vld [vmem:[#allocation10 + $0x28] sm:$0xff]
        %v410 = vld [vmem:[#allocation10 + $0x30] sm:$0xff]
        %v411 = vld [vmem:[#allocation10 + $0x38] sm:$0xff]
        %v412 = vld [vmem:[#allocation10 + $0x40] sm:$0xff]
        %v413 = vld [vmem:[#allocation10 + $0x48] sm:$0xff]
        %v414 = vld [vmem:[#allocation10 + $0x50] sm:$0xff]
        %v415 = vld [vmem:[#allocation10 + $0x58] sm:$0xff]
        %v416 = vld [vmem:[#allocation10 + $0x60] sm:$0xff]
        %v417 = vld [vmem:[#allocation10 + $0x68] sm:$0xff]
        %v418 = vld [vmem:[#allocation10 + $0x70] sm:$0xff]
        %v419 = vld [vmem:[#allocation10 + $0x78] sm:$0xff]
        %420 = vst [vmem:[#allocation2] sm:$0xff] 0.0
        %421 = vst [vmem:[#allocation2 + $0x8] sm:$0x1] 0.0
        %422 = vst [vmem:[#allocation2 + $0x29] sm:$0xff] 0.0
        %423 = vst [vmem:[#allocation2 + $0x31] sm:$0x1] 0.0
        %424 = vst [vmem:[#allocation2 + $0x9] sm:$0xff] %v392
        %425 = vst [vmem:[#allocation2 + $0x11] sm:$0xff] %v393
        %426 = vst [vmem:[#allocation2 + $0x19] sm:$0xff] %v394
        %427 = vst [vmem:[#allocation2 + $0x21] sm:$0xff] %v395
        %v428 = vld [vmem:[#allocation2] sm:$0xff]
        %v429 = vld [vmem:[#allocation2 + $0x8] sm:$0xff]
        %v430 = vld [vmem:[#allocation2 + $0x10] sm:$0xff]
        %v431 = vld [vmem:[#allocation2 + $0x18] sm:$0xff]
        %v432 = vld [vmem:[#allocation2 + $0x20] sm:$0xff]
        %v433 = vld [vmem:[#allocation2 + $0x28] sm:$0xff]
        %435 = vset.pattern.permute.xlu0 0
        %436 = vperm.xlu0 %435, %v396
        %v437 = vpop.permute.xlu0 %436
        %440 = vset.pattern.permute.xlu0 0
        %441 = vperm.xlu0 %440, %v397
        %v442 = vpop.permute.xlu0 %441
        %445 = vset.pattern.permute.xlu0 0
        %446 = vperm.xlu0 %445, %v398
        %v447 = vpop.permute.xlu0 %446
        %450 = vset.pattern.permute.xlu0 0
        %451 = vperm.xlu0 %450, %v399
        %v452 = vpop.permute.xlu0 %451
        %455 = vset.pattern.permute.xlu0 0
        %456 = vperm.xlu0 %455, %v400
        %v457 = vpop.permute.xlu0 %456
        %460 = vset.pattern.permute.xlu0 0
        %461 = vperm.xlu0 %460, %v401
        %v462 = vpop.permute.xlu0 %461
        %v464 = vmul.f32 %v428, %v437
        %v465 = vmul.f32 %v429, %v442
        %v466 = vmul.f32 %v430, %v447
        %v467 = vmul.f32 %v431, %v452
        %v468 = vmul.f32 %v432, %v457
        %v469 = vmul.f32 %v433, %v462
        %v470 = vpack.c.bf16 %v464, %v464
        %v471 = vpack.c.bf16 %v465, %v465
        %v472 = vpack.c.bf16 %v466, %v466
        %v473 = vpack.c.bf16 %v467, %v467
        %v474 = vpack.c.bf16 %v468, %v468
        %v475 = vpack.c.bf16 %v469, %v469
        %v476 = vld [vmem:[#allocation2 + $0x1] sm:$0xff]
        %v477 = vld [vmem:[#allocation2 + $0x9] sm:$0xff]
        %v478 = vld [vmem:[#allocation2 + $0x11] sm:$0xff]
        %v479 = vld [vmem:[#allocation2 + $0x19] sm:$0xff]
        %v480 = vld [vmem:[#allocation2 + $0x21] sm:$0xff]
        %v481 = vld [vmem:[#allocation2 + $0x29] sm:$0xff]
        %v482 = vpack.c.bf16 %v476, %v476
        %v483 = vpack.c.bf16 %v477, %v477
        %v484 = vpack.c.bf16 %v478, %v478
        %v485 = vpack.c.bf16 %v479, %v479
        %v486 = vpack.c.bf16 %v480, %v480
        %v487 = vpack.c.bf16 %v481, %v481
        %v488 = vld [vmem:[#allocation2 + $0x2] sm:$0xff]
        %v489 = vld [vmem:[#allocation2 + $0xa] sm:$0xff]
        %v490 = vld [vmem:[#allocation2 + $0x12] sm:$0xff]
        %v491 = vld [vmem:[#allocation2 + $0x1a] sm:$0xff]
        %v492 = vld [vmem:[#allocation2 + $0x22] sm:$0xff]
        %v493 = vld [vmem:[#allocation2 + $0x2a] sm:$0xff]
        %494 = vset.pattern.permute.xlu0 1
        %495 = vperm.xlu0 %494, %v396
        %v496 = vpop.permute.xlu0 %495
        %498 = vset.pattern.permute.xlu0 1
        %499 = vperm.xlu0 %498, %v397
        %v500 = vpop.permute.xlu0 %499
        %502 = vset.pattern.permute.xlu0 1
        %503 = vperm.xlu0 %502, %v398
        %v504 = vpop.permute.xlu0 %503
        %506 = vset.pattern.permute.xlu0 1
        %507 = vperm.xlu0 %506, %v399
        %v508 = vpop.permute.xlu0 %507
        %510 = vset.pattern.permute.xlu0 1
        %511 = vperm.xlu0 %510, %v400
        %v512 = vpop.permute.xlu0 %511
        %514 = vset.pattern.permute.xlu0 1
        %515 = vperm.xlu0 %514, %v401
        %v516 = vpop.permute.xlu0 %515
        %v518 = vmul.f32 %v488, %v496
        %v519 = vmul.f32 %v489, %v500
        %v520 = vmul.f32 %v490, %v504
        %v521 = vmul.f32 %v491, %v508
        %v522 = vmul.f32 %v492, %v512
        %v523 = vmul.f32 %v493, %v516
        %v524 = vpack.c.bf16 %v518, %v518
        %v525 = vpack.c.bf16 %v519, %v519
        %v526 = vpack.c.bf16 %v520, %v520
        %v527 = vpack.c.bf16 %v521, %v521
        %v528 = vpack.c.bf16 %v522, %v522
        %v529 = vpack.c.bf16 %v523, %v523
        %v536 = vunpack.c.l.b16 %v470
        %v537 = vunpack.c.l.b16 %v471
        %v538 = vunpack.c.l.b16 %v472
        %v539 = vunpack.c.l.b16 %v473
        %v540 = vunpack.c.l.b16 %v474
        %v541 = vunpack.c.l.b16 %v475
        %v542 = vpack.c.b16 %v537, %v536
        %v543 = vpack.c.b16 %v539, %v538
        %v544 = vpack.c.b16 %v541, %v540
        %v554 = vunpack.c.l.b16 %v482
        %v555 = vunpack.c.l.b16 %v483
        %v556 = vunpack.c.l.b16 %v484
        %v557 = vunpack.c.l.b16 %v485
        %v558 = vunpack.c.l.b16 %v486
        %v559 = vunpack.c.l.b16 %v487
        %v560 = vpack.c.b16 %v555, %v554
        %v561 = vpack.c.b16 %v557, %v556
        %v562 = vpack.c.b16 %v559, %v558
        %v572 = vunpack.c.l.b16 %v524
        %v573 = vunpack.c.l.b16 %v525
        %v574 = vunpack.c.l.b16 %v526
        %v575 = vunpack.c.l.b16 %v527
        %v576 = vunpack.c.l.b16 %v528
        %v577 = vunpack.c.l.b16 %v529
        %v578 = vpack.c.b16 %v573, %v572
        %v579 = vpack.c.b16 %v575, %v574
        %v580 = vpack.c.b16 %v577, %v576
        %vm584 = vcmask 1043456
        %v585 = vrot.slane %v542, 4
        %v586 = vrot.slane %v543, 4
        %v587 = vsel %vm584, %v585, %v586
        %v588 = vrot.slane %v560, 4
        %v589 = vrot.slane %v561, 4
        %v590 = vsel %vm584, %v588, %v589
        %v591 = vrot.slane %v578, 4
        %v592 = vrot.slane %v579, 4
        %v593 = vsel %vm584, %v591, %v592
        %v594 = vrot.slane %v544, 4
        %v595 = vsel %vm584, %v586, %v594
        %v596 = vrot.slane %v562, 4
        %v597 = vsel %vm584, %v589, %v596
        %v598 = vrot.slane %v580, 4
        %v599 = vsel %vm584, %v592, %v598
        %v606 = vld [vmem:[#allocation7] sm:$0xf]
        %v607 = vld [vmem:[#allocation7 + $0x4] sm:$0xf]
        %v608 = vld [vmem:[#allocation7 + $0x8] sm:$0xf]
        %v609 = vld [vmem:[#allocation7 + $0xc] sm:$0xf]
        %v610 = vld [vmem:[#allocation7 + $0x10] sm:$0xf]
        %v611 = vld [vmem:[#allocation7 + $0x14] sm:$0xf]
        %v612 = vld [vmem:[#allocation7 + $0x18] sm:$0xf]
        %v613 = vld [vmem:[#allocation7 + $0x1c] sm:$0xf]
        %v614 = vld [vmem:[#allocation7 + $0x20] sm:$0xf]
        %v615 = vld [vmem:[#allocation7 + $0x24] sm:$0xf]
        %v616 = vld [vmem:[#allocation7 + $0x28] sm:$0xf]
        %v617 = vld [vmem:[#allocation7 + $0x2c] sm:$0xf]
        %v618 = vld [vmem:[#allocation7 + $0x30] sm:$0xf]
        %v619 = vld [vmem:[#allocation7 + $0x34] sm:$0xf]
        %v620 = vld [vmem:[#allocation7 + $0x38] sm:$0xf]
        %v621 = vld [vmem:[#allocation7 + $0x3c] sm:$0xf]
        %v622 = vld [vmem:[#allocation7 + $0x40] sm:$0xf]
        %v623 = vld [vmem:[#allocation7 + $0x44] sm:$0xf]
        %v624 = vld [vmem:[#allocation7 + $0x48] sm:$0xf]
        %v625 = vld [vmem:[#allocation7 + $0x4c] sm:$0xf]
        %v626 = vld [vmem:[#allocation7 + $0x50] sm:$0xf]
        %v627 = vld [vmem:[#allocation7 + $0x54] sm:$0xf]
        %v628 = vld [vmem:[#allocation7 + $0x58] sm:$0xf]
        %v629 = vld [vmem:[#allocation7 + $0x5c] sm:$0xf]
        %v630 = vld [vmem:[#allocation7 + $0x60] sm:$0xf]
        %v631 = vld [vmem:[#allocation7 + $0x64] sm:$0xf]
        %v632 = vld [vmem:[#allocation7 + $0x68] sm:$0xf]
        %v633 = vld [vmem:[#allocation7 + $0x6c] sm:$0xf]
        %v634 = vld [vmem:[#allocation7 + $0x70] sm:$0xf]
        %v635 = vld [vmem:[#allocation7 + $0x74] sm:$0xf]
        %v636 = vld [vmem:[#allocation7 + $0x78] sm:$0xf]
        %v637 = vld [vmem:[#allocation7 + $0x7c] sm:$0xf]
        %v638 = vld [vmem:[#allocation7 + $0x80] sm:$0xf]
        %v639 = vld [vmem:[#allocation7 + $0x84] sm:$0xf]
        %v640 = vld [vmem:[#allocation7 + $0x88] sm:$0xf]
        %v641 = vld [vmem:[#allocation7 + $0x8c] sm:$0xf]
        %v642 = vld [vmem:[#allocation7 + $0x90] sm:$0xf]
        %v643 = vld [vmem:[#allocation7 + $0x94] sm:$0xf]
        %v644 = vld [vmem:[#allocation7 + $0x98] sm:$0xf]
        %v645 = vld [vmem:[#allocation7 + $0x9c] sm:$0xf]
        %v646 = vld [vmem:[#allocation7 + $0xa0] sm:$0xf]
        %v647 = vld [vmem:[#allocation7 + $0xa4] sm:$0xf]
        %v648 = vld [vmem:[#allocation7 + $0xa8] sm:$0xf]
        %v649 = vld [vmem:[#allocation7 + $0xac] sm:$0xf]
        %v650 = vld [vmem:[#allocation7 + $0xb0] sm:$0xf]
        %v651 = vld [vmem:[#allocation7 + $0xb4] sm:$0xf]
        %v652 = vld [vmem:[#allocation7 + $0xb8] sm:$0xf]
        %v653 = vld [vmem:[#allocation7 + $0xbc] sm:$0xf]
        %v654 = vld [vmem:[#allocation7 + $0xc0] sm:$0xf]
        %v655 = vld [vmem:[#allocation7 + $0xc4] sm:$0xf]
        %v656 = vld [vmem:[#allocation7 + $0xc8] sm:$0xf]
        %v657 = vld [vmem:[#allocation7 + $0xcc] sm:$0xf]
        %v658 = vld [vmem:[#allocation7 + $0xd0] sm:$0xf]
        %v659 = vld [vmem:[#allocation7 + $0xd4] sm:$0xf]
        %v660 = vld [vmem:[#allocation7 + $0xd8] sm:$0xf]
        %v661 = vld [vmem:[#allocation7 + $0xdc] sm:$0xf]
        %v662 = vld [vmem:[#allocation7 + $0xe0] sm:$0xf]
        %v663 = vld [vmem:[#allocation7 + $0xe4] sm:$0xf]
        %v664 = vld [vmem:[#allocation7 + $0xe8] sm:$0xf]
        %v665 = vld [vmem:[#allocation7 + $0xec] sm:$0xf]
        %v666 = vld [vmem:[#allocation7 + $0xf0] sm:$0xf]
        %v667 = vld [vmem:[#allocation7 + $0xf4] sm:$0xf]
        %v668 = vld [vmem:[#allocation7 + $0xf8] sm:$0xf]
        %v669 = vld [vmem:[#allocation7 + $0xfc] sm:$0xf]
        %v670 = vld [vmem:[#allocation7 + $0x100] sm:$0xf]
        %v671 = vld [vmem:[#allocation7 + $0x104] sm:$0xf]
        %v672 = vld [vmem:[#allocation7 + $0x108] sm:$0xf]
        %v673 = vld [vmem:[#allocation7 + $0x10c] sm:$0xf]
        %v674 = vld [vmem:[#allocation7 + $0x110] sm:$0xf]
        %v675 = vld [vmem:[#allocation7 + $0x114] sm:$0xf]
        %v676 = vld [vmem:[#allocation7 + $0x118] sm:$0xf]
        %v677 = vld [vmem:[#allocation7 + $0x11c] sm:$0xf]
        %v678 = vld [vmem:[#allocation7 + $0x120] sm:$0xf]
        %v679 = vld [vmem:[#allocation7 + $0x124] sm:$0xf]
        %v680 = vld [vmem:[#allocation7 + $0x128] sm:$0xf]
        %v681 = vld [vmem:[#allocation7 + $0x12c] sm:$0xf]
        %v682 = vld [vmem:[#allocation7 + $0x130] sm:$0xf]
        %v683 = vld [vmem:[#allocation7 + $0x134] sm:$0xf]
        %v684 = vld [vmem:[#allocation7 + $0x138] sm:$0xf]
        %v685 = vld [vmem:[#allocation7 + $0x13c] sm:$0xf]
        %v686 = vld [vmem:[#allocation7 + $0x140] sm:$0xf]
        %v687 = vld [vmem:[#allocation7 + $0x144] sm:$0xf]
        %v688 = vld [vmem:[#allocation7 + $0x148] sm:$0xf]
        %v689 = vld [vmem:[#allocation7 + $0x14c] sm:$0xf]
        %v690 = vld [vmem:[#allocation7 + $0x150] sm:$0xf]
        %v691 = vld [vmem:[#allocation7 + $0x154] sm:$0xf]
        %v692 = vld [vmem:[#allocation7 + $0x158] sm:$0xf]
        %v693 = vld [vmem:[#allocation7 + $0x15c] sm:$0xf]
        %v694 = vld [vmem:[#allocation7 + $0x160] sm:$0xf]
        %v695 = vld [vmem:[#allocation7 + $0x164] sm:$0xf]
        %v696 = vld [vmem:[#allocation7 + $0x168] sm:$0xf]
        %v697 = vld [vmem:[#allocation7 + $0x16c] sm:$0xf]
        %v698 = vld [vmem:[#allocation7 + $0x170] sm:$0xf]
        %v699 = vld [vmem:[#allocation7 + $0x174] sm:$0xf]
        %v700 = vld [vmem:[#allocation7 + $0x178] sm:$0xf]
        %v701 = vld [vmem:[#allocation7 + $0x17c] sm:$0xf]
        %v702 = vld [vmem:[#allocation7 + $0x180] sm:$0xf]
        %v703 = vld [vmem:[#allocation7 + $0x184] sm:$0xf]
        %v704 = vld [vmem:[#allocation7 + $0x188] sm:$0xf]
        %v705 = vld [vmem:[#allocation7 + $0x18c] sm:$0xf]
        %v706 = vld [vmem:[#allocation7 + $0x190] sm:$0xf]
        %v707 = vld [vmem:[#allocation7 + $0x194] sm:$0xf]
        %v708 = vld [vmem:[#allocation7 + $0x198] sm:$0xf]
        %v709 = vld [vmem:[#allocation7 + $0x19c] sm:$0xf]
        %v710 = vld [vmem:[#allocation7 + $0x1a0] sm:$0xf]
        %v711 = vld [vmem:[#allocation7 + $0x1a4] sm:$0xf]
        %v712 = vld [vmem:[#allocation7 + $0x1a8] sm:$0xf]
        %v713 = vld [vmem:[#allocation7 + $0x1ac] sm:$0xf]
        %v714 = vld [vmem:[#allocation7 + $0x1b0] sm:$0xf]
        %v715 = vld [vmem:[#allocation7 + $0x1b4] sm:$0xf]
        %v716 = vld [vmem:[#allocation7 + $0x1b8] sm:$0xf]
        %v717 = vld [vmem:[#allocation7 + $0x1bc] sm:$0xf]
        %v718 = vld [vmem:[#allocation7 + $0x1c0] sm:$0xf]
        %v719 = vld [vmem:[#allocation7 + $0x1c4] sm:$0xf]
        %v720 = vld [vmem:[#allocation7 + $0x1c8] sm:$0xf]
        %v721 = vld [vmem:[#allocation7 + $0x1cc] sm:$0xf]
        %v722 = vld [vmem:[#allocation7 + $0x1d0] sm:$0xf]
        %v723 = vld [vmem:[#allocation7 + $0x1d4] sm:$0xf]
        %v724 = vld [vmem:[#allocation7 + $0x1d8] sm:$0xf]
        %v725 = vld [vmem:[#allocation7 + $0x1dc] sm:$0xf]
        %v726 = vld [vmem:[#allocation7 + $0x1e0] sm:$0xf]
        %v727 = vld [vmem:[#allocation7 + $0x1e4] sm:$0xf]
        %v728 = vld [vmem:[#allocation7 + $0x1e8] sm:$0xf]
        %v729 = vld [vmem:[#allocation7 + $0x1ec] sm:$0xf]
        %v730 = vld [vmem:[#allocation7 + $0x1f0] sm:$0xf]
        %v731 = vld [vmem:[#allocation7 + $0x1f4] sm:$0xf]
        %v732 = vld [vmem:[#allocation7 + $0x1f8] sm:$0xf]
        %v733 = vld [vmem:[#allocation7 + $0x1fc] sm:$0xf]
        %v734 = vld [vmem:[#allocation7 + $0x200] sm:$0xf]
        %v735 = vld [vmem:[#allocation7 + $0x204] sm:$0xf]
        %v736 = vld [vmem:[#allocation7 + $0x208] sm:$0xf]
        %v737 = vld [vmem:[#allocation7 + $0x20c] sm:$0xf]
        %v738 = vld [vmem:[#allocation7 + $0x210] sm:$0xf]
        %v739 = vld [vmem:[#allocation7 + $0x214] sm:$0xf]
        %v740 = vld [vmem:[#allocation7 + $0x218] sm:$0xf]
        %v741 = vld [vmem:[#allocation7 + $0x21c] sm:$0xf]
        %v742 = vld [vmem:[#allocation7 + $0x220] sm:$0xf]
        %v743 = vld [vmem:[#allocation7 + $0x224] sm:$0xf]
        %v744 = vld [vmem:[#allocation7 + $0x228] sm:$0xf]
        %v745 = vld [vmem:[#allocation7 + $0x22c] sm:$0xf]
        %v746 = vld [vmem:[#allocation7 + $0x230] sm:$0xf]
        %v747 = vld [vmem:[#allocation7 + $0x234] sm:$0xf]
        %v748 = vld [vmem:[#allocation7 + $0x238] sm:$0xf]
        %v749 = vld [vmem:[#allocation7 + $0x23c] sm:$0xf]
        %v894 = vunpack.c.l.b16 %v606
        %v895 = vunpack.c.l.b16 %v607
        %v896 = vunpack.c.l.b16 %v608
        %v897 = vunpack.c.l.b16 %v609
        %v898 = vunpack.c.l.b16 %v610
        %v899 = vunpack.c.l.b16 %v611
        %v900 = vunpack.c.l.b16 %v612
        %v901 = vunpack.c.l.b16 %v613
        %v902 = vunpack.c.l.b16 %v614
        %v903 = vunpack.c.l.b16 %v615
        %v904 = vunpack.c.l.b16 %v616
        %v905 = vunpack.c.l.b16 %v617
        %v906 = vunpack.c.l.b16 %v618
        %v907 = vunpack.c.l.b16 %v619
        %v908 = vunpack.c.l.b16 %v620
        %v909 = vunpack.c.l.b16 %v621
        %v910 = vunpack.c.l.b16 %v622
        %v911 = vunpack.c.l.b16 %v623
        %v912 = vunpack.c.l.b16 %v624
        %v913 = vunpack.c.l.b16 %v625
        %v914 = vunpack.c.l.b16 %v626
        %v915 = vunpack.c.l.b16 %v627
        %v916 = vunpack.c.l.b16 %v628
        %v917 = vunpack.c.l.b16 %v629
        %v918 = vunpack.c.l.b16 %v630
        %v919 = vunpack.c.l.b16 %v631
        %v920 = vunpack.c.l.b16 %v632
        %v921 = vunpack.c.l.b16 %v633
        %v922 = vunpack.c.l.b16 %v634
        %v923 = vunpack.c.l.b16 %v635
        %v924 = vunpack.c.l.b16 %v636
        %v925 = vunpack.c.l.b16 %v637
        %v926 = vunpack.c.l.b16 %v638
        %v927 = vunpack.c.l.b16 %v639
        %v928 = vunpack.c.l.b16 %v640
        %v929 = vunpack.c.l.b16 %v641
        %v930 = vunpack.c.l.b16 %v642
        %v931 = vunpack.c.l.b16 %v643
        %v932 = vunpack.c.l.b16 %v644
        %v933 = vunpack.c.l.b16 %v645
        %v934 = vunpack.c.l.b16 %v646
        %v935 = vunpack.c.l.b16 %v647
        %v936 = vunpack.c.l.b16 %v648
        %v937 = vunpack.c.l.b16 %v649
        %v938 = vunpack.c.l.b16 %v650
        %v939 = vunpack.c.l.b16 %v651
        %v940 = vunpack.c.l.b16 %v652
        %v941 = vunpack.c.l.b16 %v653
        %v942 = vunpack.c.l.b16 %v654
        %v943 = vunpack.c.l.b16 %v655
        %v944 = vunpack.c.l.b16 %v656
        %v945 = vunpack.c.l.b16 %v657
        %v946 = vunpack.c.l.b16 %v658
        %v947 = vunpack.c.l.b16 %v659
        %v948 = vunpack.c.l.b16 %v660
        %v949 = vunpack.c.l.b16 %v661
        %v950 = vunpack.c.l.b16 %v662
        %v951 = vunpack.c.l.b16 %v663
        %v952 = vunpack.c.l.b16 %v664
        %v953 = vunpack.c.l.b16 %v665
        %v954 = vunpack.c.l.b16 %v666
        %v955 = vunpack.c.l.b16 %v667
        %v956 = vunpack.c.l.b16 %v668
        %v957 = vunpack.c.l.b16 %v669
        %v958 = vunpack.c.l.b16 %v670
        %v959 = vunpack.c.l.b16 %v671
        %v960 = vunpack.c.l.b16 %v672
        %v961 = vunpack.c.l.b16 %v673
        %v962 = vunpack.c.l.b16 %v674
        %v963 = vunpack.c.l.b16 %v675
        %v964 = vunpack.c.l.b16 %v676
        %v965 = vunpack.c.l.b16 %v677
        %v966 = vunpack.c.l.b16 %v678
        %v967 = vunpack.c.l.b16 %v679
        %v968 = vunpack.c.l.b16 %v680
        %v969 = vunpack.c.l.b16 %v681
        %v970 = vunpack.c.l.b16 %v682
        %v971 = vunpack.c.l.b16 %v683
        %v972 = vunpack.c.l.b16 %v684
        %v973 = vunpack.c.l.b16 %v685
        %v974 = vunpack.c.l.b16 %v686
        %v975 = vunpack.c.l.b16 %v687
        %v976 = vunpack.c.l.b16 %v688
        %v977 = vunpack.c.l.b16 %v689
        %v978 = vunpack.c.l.b16 %v690
        %v979 = vunpack.c.l.b16 %v691
        %v980 = vunpack.c.l.b16 %v692
        %v981 = vunpack.c.l.b16 %v693
        %v982 = vunpack.c.l.b16 %v694
        %v983 = vunpack.c.l.b16 %v695
        %v984 = vunpack.c.l.b16 %v696
        %v985 = vunpack.c.l.b16 %v697
        %v986 = vunpack.c.l.b16 %v698
        %v987 = vunpack.c.l.b16 %v699
        %v988 = vunpack.c.l.b16 %v700
        %v989 = vunpack.c.l.b16 %v701
        %v990 = vunpack.c.l.b16 %v702
        %v991 = vunpack.c.l.b16 %v703
        %v992 = vunpack.c.l.b16 %v704
        %v993 = vunpack.c.l.b16 %v705
        %v994 = vunpack.c.l.b16 %v706
        %v995 = vunpack.c.l.b16 %v707
        %v996 = vunpack.c.l.b16 %v708
        %v997 = vunpack.c.l.b16 %v709
        %v998 = vunpack.c.l.b16 %v710
        %v999 = vunpack.c.l.b16 %v711
        %v1000 = vunpack.c.l.b16 %v712
        %v1001 = vunpack.c.l.b16 %v713
        %v1002 = vunpack.c.l.b16 %v714
        %v1003 = vunpack.c.l.b16 %v715
        %v1004 = vunpack.c.l.b16 %v716
        %v1005 = vunpack.c.l.b16 %v717
        %v1006 = vunpack.c.l.b16 %v718
        %v1007 = vunpack.c.l.b16 %v719
        %v1008 = vunpack.c.l.b16 %v720
        %v1009 = vunpack.c.l.b16 %v721
        %v1010 = vunpack.c.l.b16 %v722
        %v1011 = vunpack.c.l.b16 %v723
        %v1012 = vunpack.c.l.b16 %v724
        %v1013 = vunpack.c.l.b16 %v725
        %v1014 = vunpack.c.l.b16 %v726
        %v1015 = vunpack.c.l.b16 %v727
        %v1016 = vunpack.c.l.b16 %v728
        %v1017 = vunpack.c.l.b16 %v729
        %v1018 = vunpack.c.l.b16 %v730
        %v1019 = vunpack.c.l.b16 %v731
        %v1020 = vunpack.c.l.b16 %v732
        %v1021 = vunpack.c.l.b16 %v733
        %v1022 = vunpack.c.l.b16 %v734
        %v1023 = vunpack.c.l.b16 %v735
        %v1024 = vunpack.c.l.b16 %v736
        %v1025 = vunpack.c.l.b16 %v737
        %v1026 = vunpack.c.l.b16 %v738
        %v1027 = vunpack.c.l.b16 %v739
        %v1028 = vunpack.c.l.b16 %v740
        %v1029 = vunpack.c.l.b16 %v741
        %v1030 = vunpack.c.l.b16 %v742
        %v1031 = vunpack.c.l.b16 %v743
        %v1032 = vunpack.c.l.b16 %v744
        %v1033 = vunpack.c.l.b16 %v745
        %v1034 = vunpack.c.l.b16 %v746
        %v1035 = vunpack.c.l.b16 %v747
        %v1036 = vunpack.c.l.b16 %v748
        %v1037 = vunpack.c.l.b16 %v749
        %v1038 = vpack.c.b16 %v895, %v894
        %v1039 = vpack.c.b16 %v897, %v896
        %v1040 = vpack.c.b16 %v899, %v898
        %v1041 = vpack.c.b16 %v901, %v900
        %v1042 = vpack.c.b16 %v903, %v902
        %v1043 = vpack.c.b16 %v905, %v904
        %v1044 = vpack.c.b16 %v907, %v906
        %v1045 = vpack.c.b16 %v909, %v908
        %v1046 = vpack.c.b16 %v911, %v910
        %v1047 = vpack.c.b16 %v913, %v912
        %v1048 = vpack.c.b16 %v915, %v914
        %v1049 = vpack.c.b16 %v917, %v916
        %v1050 = vpack.c.b16 %v919, %v918
        %v1051 = vpack.c.b16 %v921, %v920
        %v1052 = vpack.c.b16 %v923, %v922
        %v1053 = vpack.c.b16 %v925, %v924
        %v1054 = vpack.c.b16 %v927, %v926
        %v1055 = vpack.c.b16 %v929, %v928
        %v1056 = vpack.c.b16 %v931, %v930
        %v1057 = vpack.c.b16 %v933, %v932
        %v1058 = vpack.c.b16 %v935, %v934
        %v1059 = vpack.c.b16 %v937, %v936
        %v1060 = vpack.c.b16 %v939, %v938
        %v1061 = vpack.c.b16 %v941, %v940
        %v1062 = vpack.c.b16 %v943, %v942
        %v1063 = vpack.c.b16 %v945, %v944
        %v1064 = vpack.c.b16 %v947, %v946
        %v1065 = vpack.c.b16 %v949, %v948
        %v1066 = vpack.c.b16 %v951, %v950
        %v1067 = vpack.c.b16 %v953, %v952
        %v1068 = vpack.c.b16 %v955, %v954
        %v1069 = vpack.c.b16 %v957, %v956
        %v1070 = vpack.c.b16 %v959, %v958
        %v1071 = vpack.c.b16 %v961, %v960
        %v1072 = vpack.c.b16 %v963, %v962
        %v1073 = vpack.c.b16 %v965, %v964
        %v1074 = vpack.c.b16 %v967, %v966
        %v1075 = vpack.c.b16 %v969, %v968
        %v1076 = vpack.c.b16 %v971, %v970
        %v1077 = vpack.c.b16 %v973, %v972
        %v1078 = vpack.c.b16 %v975, %v974
        %v1079 = vpack.c.b16 %v977, %v976
        %v1080 = vpack.c.b16 %v979, %v978
        %v1081 = vpack.c.b16 %v981, %v980
        %v1082 = vpack.c.b16 %v983, %v982
        %v1083 = vpack.c.b16 %v985, %v984
        %v1084 = vpack.c.b16 %v987, %v986
        %v1085 = vpack.c.b16 %v989, %v988
        %v1086 = vpack.c.b16 %v991, %v990
        %v1087 = vpack.c.b16 %v993, %v992
        %v1088 = vpack.c.b16 %v995, %v994
        %v1089 = vpack.c.b16 %v997, %v996
        %v1090 = vpack.c.b16 %v999, %v998
        %v1091 = vpack.c.b16 %v1001, %v1000
        %v1092 = vpack.c.b16 %v1003, %v1002
        %v1093 = vpack.c.b16 %v1005, %v1004
        %v1094 = vpack.c.b16 %v1007, %v1006
        %v1095 = vpack.c.b16 %v1009, %v1008
        %v1096 = vpack.c.b16 %v1011, %v1010
        %v1097 = vpack.c.b16 %v1013, %v1012
        %v1098 = vpack.c.b16 %v1015, %v1014
        %v1099 = vpack.c.b16 %v1017, %v1016
        %v1100 = vpack.c.b16 %v1019, %v1018
        %v1101 = vpack.c.b16 %v1021, %v1020
        %v1102 = vpack.c.b16 %v1023, %v1022
        %v1103 = vpack.c.b16 %v1025, %v1024
        %v1104 = vpack.c.b16 %v1027, %v1026
        %v1105 = vpack.c.b16 %v1029, %v1028
        %v1106 = vpack.c.b16 %v1031, %v1030
        %v1107 = vpack.c.b16 %v1033, %v1032
        %v1108 = vpack.c.b16 %v1035, %v1034
        %v1109 = vpack.c.b16 %v1037, %v1036
        %1182 = vmatpush.bf16.msra.mxu0 %v1045
        %1183 = vmatpush.bf16.msra.mxu0 %v1044
        %1184 = vmatpush.bf16.msra.mxu0 %v1043
        %1185 = vmatpush.bf16.msra.mxu0 %v1042
        %1186 = vmatpush.bf16.msra.mxu0 %v1041
        %1187 = vmatpush.bf16.msra.mxu0 %v1040
        %1188 = vmatpush.bf16.msra.mxu0 %v1039
        %1189 = vmatpush.bf16.msra.mxu0 %v1038
        %1190 = vmatmul.bf16.gmra.mxu0 %v542
        %v1191 = vpop.f32.mrf.mxu0
        %v1192 = vadd.f32 0.0, %v1191
        %v1193 = vpop.f32.mrf.mxu0
        %v1194 = vadd.f32 0.0, %v1193
        %1195 = vmatmul.bf16.gmra.mxu0 %v543
        %v1196 = vpop.f32.mrf.mxu0
        %v1197 = vadd.f32 0.0, %v1196
        %v1198 = vpop.f32.mrf.mxu0
        %v1199 = vadd.f32 0.0, %v1198
        %1200 = vdwg.mxu0
        %1201 = vmatpush.bf16.msra.mxu0 %v1053
        %1202 = vmatpush.bf16.msra.mxu0 %v1052
        %1203 = vmatpush.bf16.msra.mxu0 %v1051
        %1204 = vmatpush.bf16.msra.mxu0 %v1050
        %1205 = vmatpush.bf16.msra.mxu0 %v1049
        %1206 = vmatpush.bf16.msra.mxu0 %v1048
        %1207 = vmatpush.bf16.msra.mxu0 %v1047
        %1208 = vmatpush.bf16.msra.mxu0 %v1046
        %1209 = vmatmul.bf16.gmra.mxu0 %v560
        %v1210 = vpop.f32.mrf.mxu0
        %v1211 = vadd.f32 %v1192, %v1210
        %v1212 = vpop.f32.mrf.mxu0
        %v1213 = vadd.f32 %v1194, %v1212
        %1214 = vmatmul.bf16.gmra.mxu0 %v561
        %v1215 = vpop.f32.mrf.mxu0
        %v1216 = vadd.f32 %v1197, %v1215
        %v1217 = vpop.f32.mrf.mxu0
        %v1218 = vadd.f32 %v1199, %v1217
        %1219 = vdwg.mxu0
        %1220 = vmatpush.bf16.msra.mxu0 %v1061
        %1221 = vmatpush.bf16.msra.mxu0 %v1060
        %1222 = vmatpush.bf16.msra.mxu0 %v1059
        %1223 = vmatpush.bf16.msra.mxu0 %v1058
        %1224 = vmatpush.bf16.msra.mxu0 %v1057
        %1225 = vmatpush.bf16.msra.mxu0 %v1056
        %1226 = vmatpush.bf16.msra.mxu0 %v1055
        %1227 = vmatpush.bf16.msra.mxu0 %v1054
        %1228 = vmatmul.bf16.gmra.mxu0 %v578
        %v1229 = vpop.f32.mrf.mxu0
        %v1230 = vadd.f32 %v1211, %v1229
        %v1231 = vpop.f32.mrf.mxu0
        %v1232 = vadd.f32 %v1213, %v1231
        %1233 = vmatmul.bf16.gmra.mxu0 %v579
        %v1234 = vpop.f32.mrf.mxu0
        %v1235 = vadd.f32 %v1216, %v1234
        %v1236 = vpop.f32.mrf.mxu0
        %v1237 = vadd.f32 %v1218, %v1236
        %1238 = vdwg.mxu0
        %1239 = vmatpush.bf16.msra.mxu0 %v1069
        %1240 = vmatpush.bf16.msra.mxu0 %v1068
        %1241 = vmatpush.bf16.msra.mxu0 %v1067
        %1242 = vmatpush.bf16.msra.mxu0 %v1066
        %1243 = vmatpush.bf16.msra.mxu0 %v1065
        %1244 = vmatpush.bf16.msra.mxu0 %v1064
        %1245 = vmatpush.bf16.msra.mxu0 %v1063
        %1246 = vmatpush.bf16.msra.mxu0 %v1062
        %1247 = vmatmul.bf16.gmra.mxu0 %v587
        %v1248 = vpop.f32.mrf.mxu0
        %v1249 = vadd.f32 %v1230, %v1248
        %v1250 = vpop.f32.mrf.mxu0
        %v1251 = vadd.f32 %v1232, %v1250
        %1252 = vmatmul.bf16.gmra.mxu0 %v595
        %v1253 = vpop.f32.mrf.mxu0
        %v1254 = vadd.f32 %v1235, %v1253
        %v1255 = vpop.f32.mrf.mxu0
        %v1256 = vadd.f32 %v1237, %v1255
        %1257 = vdwg.mxu0
        %1258 = vmatpush.bf16.msra.mxu0 %v1077
        %1259 = vmatpush.bf16.msra.mxu0 %v1076
        %1260 = vmatpush.bf16.msra.mxu0 %v1075
        %1261 = vmatpush.bf16.msra.mxu0 %v1074
        %1262 = vmatpush.bf16.msra.mxu0 %v1073
        %1263 = vmatpush.bf16.msra.mxu0 %v1072
        %1264 = vmatpush.bf16.msra.mxu0 %v1071
        %1265 = vmatpush.bf16.msra.mxu0 %v1070
        %1266 = vmatmul.bf16.gmra.mxu0 %v590
        %v1267 = vpop.f32.mrf.mxu0
        %v1268 = vadd.f32 %v1249, %v1267
        %v1269 = vpop.f32.mrf.mxu0
        %v1270 = vadd.f32 %v1251, %v1269
        %1271 = vmatmul.bf16.gmra.mxu0 %v597
        %v1272 = vpop.f32.mrf.mxu0
        %v1273 = vadd.f32 %v1254, %v1272
        %v1274 = vpop.f32.mrf.mxu0
        %v1275 = vadd.f32 %v1256, %v1274
        %1276 = vdwg.mxu0
        %1277 = vmatpush.bf16.msra.mxu0 %v1085
        %1278 = vmatpush.bf16.msra.mxu0 %v1084
        %1279 = vmatpush.bf16.msra.mxu0 %v1083
        %1280 = vmatpush.bf16.msra.mxu0 %v1082
        %1281 = vmatpush.bf16.msra.mxu0 %v1081
        %1282 = vmatpush.bf16.msra.mxu0 %v1080
        %1283 = vmatpush.bf16.msra.mxu0 %v1079
        %1284 = vmatpush.bf16.msra.mxu0 %v1078
        %1285 = vmatmul.bf16.gmra.mxu0 %v593
        %v1286 = vpop.f32.mrf.mxu0
        %v1287 = vadd.f32 %v1268, %v1286
        %v1288 = vpop.f32.mrf.mxu0
        %v1289 = vadd.f32 %v1270, %v1288
        %1290 = vmatmul.bf16.gmra.mxu0 %v599
        %v1291 = vpop.f32.mrf.mxu0
        %v1292 = vadd.f32 %v1273, %v1291
        %v1293 = vpop.f32.mrf.mxu0
        %v1294 = vadd.f32 %v1275, %v1293
        %1295 = vdwg.mxu0
        %1296 = vmatpush.bf16.msra.mxu0 %v1093
        %1297 = vmatpush.bf16.msra.mxu0 %v1092
        %1298 = vmatpush.bf16.msra.mxu0 %v1091
        %1299 = vmatpush.bf16.msra.mxu0 %v1090
        %1300 = vmatpush.bf16.msra.mxu0 %v1089
        %1301 = vmatpush.bf16.msra.mxu0 %v1088
        %1302 = vmatpush.bf16.msra.mxu0 %v1087
        %1303 = vmatpush.bf16.msra.mxu0 %v1086
        %1304 = vmatmul.bf16.gmra.mxu0 %v543
        %v1305 = vpop.f32.mrf.mxu0
        %v1306 = vadd.f32 %v1287, %v1305
        %v1307 = vpop.f32.mrf.mxu0
        %v1308 = vadd.f32 %v1289, %v1307
        %1309 = vmatmul.bf16.gmra.mxu0 %v544
        %v1310 = vpop.f32.mrf.mxu0
        %v1311 = vadd.f32 %v1292, %v1310
        %v1312 = vpop.f32.mrf.mxu0
        %v1313 = vadd.f32 %v1294, %v1312
        %1314 = vdwg.mxu0
        %1315 = vmatpush.bf16.msra.mxu0 %v1101
        %1316 = vmatpush.bf16.msra.mxu0 %v1100
        %1317 = vmatpush.bf16.msra.mxu0 %v1099
        %1318 = vmatpush.bf16.msra.mxu0 %v1098
        %1319 = vmatpush.bf16.msra.mxu0 %v1097
        %1320 = vmatpush.bf16.msra.mxu0 %v1096
        %1321 = vmatpush.bf16.msra.mxu0 %v1095
        %1322 = vmatpush.bf16.msra.mxu0 %v1094
        %1323 = vmatmul.bf16.gmra.mxu0 %v561
        %v1324 = vpop.f32.mrf.mxu0
        %v1325 = vadd.f32 %v1306, %v1324
        %v1326 = vpop.f32.mrf.mxu0
        %v1327 = vadd.f32 %v1308, %v1326
        %1328 = vmatmul.bf16.gmra.mxu0 %v562
        %v1329 = vpop.f32.mrf.mxu0
        %v1330 = vadd.f32 %v1311, %v1329
        %v1331 = vpop.f32.mrf.mxu0
        %v1332 = vadd.f32 %v1313, %v1331
        %1333 = vdwg.mxu0
        %1334 = vmatpush.bf16.msra.mxu0 %v1109
        %1335 = vmatpush.bf16.msra.mxu0 %v1108
        %1336 = vmatpush.bf16.msra.mxu0 %v1107
        %1337 = vmatpush.bf16.msra.mxu0 %v1106
        %1338 = vmatpush.bf16.msra.mxu0 %v1105
        %1339 = vmatpush.bf16.msra.mxu0 %v1104
        %1340 = vmatpush.bf16.msra.mxu0 %v1103
        %1341 = vmatpush.bf16.msra.mxu0 %v1102
        %1342 = vmatmul.bf16.gmra.mxu0 %v579
        %v1343 = vpop.f32.mrf.mxu0
        %v1344 = vadd.f32 %v1325, %v1343
        %v1345 = vpop.f32.mrf.mxu0
        %v1346 = vadd.f32 %v1327, %v1345
        %1347 = vmatmul.bf16.gmra.mxu0 %v580
        %v1348 = vpop.f32.mrf.mxu0
        %v1349 = vadd.f32 %v1330, %v1348
        %v1350 = vpop.f32.mrf.mxu0
        %v1351 = vadd.f32 %v1332, %v1350
        %1352 = vdwg.mxu0
        %v1353 = vadd.f32 %v1344, %v1346
        %v1354 = vadd.f32 %v1353, %v1349
        %v1355 = vadd.f32 %v1354, %v1351
        %v1356 = vrot.slane %v1355, 4
        %v1357 = vadd.f32 %v1355, %v1356
        %v1358 = vrot.slane %v1357, 2
        %v1359 = vadd.f32 %v1357, %v1358
        %v1360 = vrot.slane %v1359, 1
        %v1361 = vadd.f32 %v1359, %v1360
        %1362 = vmatpush.msra.mxu0 %v419
        %1363 = vmatpush.msra.mxu0 %v418
        %1364 = vmatpush.msra.mxu0 %v417
        %1365 = vmatpush.msra.mxu0 %v416
        %1366 = vmatpush.msra.mxu0 %v415
        %1367 = vmatpush.msra.mxu0 %v414
        %1368 = vmatpush.msra.mxu0 %v413
        %1369 = vmatpush.msra.mxu0 %v412
        %1370 = vmatpush.msra.mxu0 %v411
        %1371 = vmatpush.msra.mxu0 %v410
        %1372 = vmatpush.msra.mxu0 %v409
        %1373 = vmatpush.msra.mxu0 %v408
        %1374 = vmatpush.msra.mxu0 %v407
        %1375 = vmatpush.msra.mxu0 %v406
        %1376 = vmatpush.msra.mxu0 %v405
        %1377 = vmatpush.msra.mxu0 %v404
        %1378 = vmatmul.f32.gmra.mxu0 %v1361
        %v1379 = vpop.f32.mrf.mxu0
        %v1380 = vadd.f32 0.0, %v1379
        %1381 = vdwg.mxu0
        %v1382 = vperm.slane %v1380, 0
        %v1383 = vsub.f32 %v1344, %v1382
        %v1384 = vsub.f32 %v1346, %v1382
        %v1385 = vsub.f32 %v1349, %v1382
        %v1386 = vsub.f32 %v1351, %v1382
        %v1387 = vmul.f32 %v1383, %v1383
        %v1388 = vmul.f32 %v1384, %v1384
        %v1389 = vmul.f32 %v1385, %v1385
        %v1390 = vmul.f32 %v1386, %v1386
        %v1391 = vadd.f32 %v1387, %v1388
        %v1392 = vadd.f32 %v1391, %v1389
        %v1393 = vadd.f32 %v1392, %v1390
        %v1394 = vrot.slane %v1393, 4
        %v1395 = vadd.f32 %v1393, %v1394
        %v1396 = vrot.slane %v1395, 2
        %v1397 = vadd.f32 %v1395, %v1396
        %v1398 = vrot.slane %v1397, 1
        %v1399 = vadd.f32 %v1397, %v1398
        %1400 = vmatpush.msra.mxu0 %v419
        %1401 = vmatpush.msra.mxu0 %v418
        %1402 = vmatpush.msra.mxu0 %v417
        %1403 = vmatpush.msra.mxu0 %v416
        %1404 = vmatpush.msra.mxu0 %v415
        %1405 = vmatpush.msra.mxu0 %v414
        %1406 = vmatpush.msra.mxu0 %v413
        %1407 = vmatpush.msra.mxu0 %v412
        %1408 = vmatpush.msra.mxu0 %v411
        %1409 = vmatpush.msra.mxu0 %v410
        %1410 = vmatpush.msra.mxu0 %v409
        %1411 = vmatpush.msra.mxu0 %v408
        %1412 = vmatpush.msra.mxu0 %v407
        %1413 = vmatpush.msra.mxu0 %v406
        %1414 = vmatpush.msra.mxu0 %v405
        %1415 = vmatpush.msra.mxu0 %v404
        %1416 = vmatmul.f32.gmra.mxu0 %v1399
        %v1417 = vpop.f32.mrf.mxu0
        %v1418 = vadd.f32 1e-05, %v1417
        %1419 = vdwg.mxu0
        %v1420 = vrsqrt.pop %v1418
        %v1421 = vmul.f32 %v1420, %v1418
        %v1422 = vmul.f32 %v1421, %v1420
        %v1423 = vmul.f32 0.5, %v1422
        %v1424 = vsub.f32 1.5, %v1423
        %v1425 = vmul.f32 %v1420, %v1424
        %vm1426 = vweird.f32 %v1418
        %vm1427 = vweird.f32 %v1420
        %vm1428 = vmor %vm1426, %vm1427
        %v1429 = vsel %vm1428, %v1420, %v1425
        %v1430 = vperm.slane %v1429, 0
        %v1431 = vmul.f32 %v1383, %v1430
        %v1432 = vmul.f32 %v1384, %v1430
        %v1433 = vmul.f32 %v1385, %v1430
        %v1434 = vmul.f32 %v1386, %v1430
        %v1436 = vperm.slane %v402, 0
        %v1438 = vmul.f32 %v1431, %v1436
        %v1439 = vmul.f32 %v1432, %v1436
        %v1440 = vmul.f32 %v1433, %v1436
        %v1441 = vmul.f32 %v1434, %v1436
        %v1443 = vperm.slane %v403, 0
        %v1445 = vadd.f32 %v1438, %v1443
        %v1446 = vadd.f32 %v1439, %v1443
        %v1447 = vadd.f32 %v1440, %v1443
        %v1448 = vadd.f32 %v1441, %v1443
        %v1449 = vsub.f32 0.0, %v1445
        %v1450 = vsub.f32 0.0, %v1446
        %v1451 = vsub.f32 0.0, %v1447
        %v1452 = vsub.f32 0.0, %v1448
        %v1453 = vmul.f32 %v1449, 1.442695
        %v1454 = vpow.pop %v1453
        %v1455 = vmul.f32 %v1450, 1.442695
        %v1456 = vpow.pop %v1455
        %v1457 = vmul.f32 %v1451, 1.442695
        %v1458 = vpow.pop %v1457
        %v1459 = vmul.f32 %v1452, 1.442695
        %v1460 = vpow.pop %v1459
        %v1461 = vadd.f32 %v1454, 1.0
        %v1462 = vadd.f32 %v1456, 1.0
        %v1463 = vadd.f32 %v1458, 1.0
        %v1464 = vadd.f32 %v1460, 1.0
        %v1465 = vrcp.pop %v1461
        %v1466 = vrcp.pop %v1462
        %v1467 = vrcp.pop %v1463
        %v1468 = vrcp.pop %v1464
        %v1469 = vmul.f32 %v1445, %v1465
        %v1470 = vmul.f32 %v1446, %v1466
        %v1471 = vmul.f32 %v1447, %v1467
        %v1472 = vmul.f32 %v1448, %v1468
        %1473 = vst [vmem:[#allocation3] sm:$0xff] 0.0
        %1474 = vst [vmem:[#allocation3 + $0x8] sm:$0x1] 0.0
        %1475 = vst [vmem:[#allocation3 + $0x29] sm:$0xff] 0.0
        %1476 = vst [vmem:[#allocation3 + $0x31] sm:$0x1] 0.0
        %1477 = vst [vmem:[#allocation3 + $0x9] sm:$0xff] %v1469
        %1478 = vst [vmem:[#allocation3 + $0x11] sm:$0xff] %v1470
        %1479 = vst [vmem:[#allocation3 + $0x19] sm:$0xff] %v1471
        %1480 = vst [vmem:[#allocation3 + $0x21] sm:$0xff] %v1472
        %v1481 = vld [vmem:[#allocation3] sm:$0xff]
        %v1482 = vld [vmem:[#allocation3 + $0x8] sm:$0xff]
        %v1483 = vld [vmem:[#allocation3 + $0x10] sm:$0xff]
        %v1484 = vld [vmem:[#allocation3 + $0x18] sm:$0xff]
        %v1485 = vld [vmem:[#allocation3 + $0x20] sm:$0xff]
        %v1486 = vld [vmem:[#allocation3 + $0x28] sm:$0xff]
        %v1487 = vmul.f32 %v1481, %v437
        %v1488 = vmul.f32 %v1482, %v442
        %v1489 = vmul.f32 %v1483, %v447
        %v1490 = vmul.f32 %v1484, %v452
        %v1491 = vmul.f32 %v1485, %v457
        %v1492 = vmul.f32 %v1486, %v462
        %v1493 = vpack.c.bf16 %v1487, %v1487
        %v1494 = vpack.c.bf16 %v1488, %v1488
        %v1495 = vpack.c.bf16 %v1489, %v1489
        %v1496 = vpack.c.bf16 %v1490, %v1490
        %v1497 = vpack.c.bf16 %v1491, %v1491
        %v1498 = vpack.c.bf16 %v1492, %v1492
        %v1499 = vld [vmem:[#allocation3 + $0x1] sm:$0xff]
        %v1500 = vld [vmem:[#allocation3 + $0x9] sm:$0xff]
        %v1501 = vld [vmem:[#allocation3 + $0x11] sm:$0xff]
        %v1502 = vld [vmem:[#allocation3 + $0x19] sm:$0xff]
        %v1503 = vld [vmem:[#allocation3 + $0x21] sm:$0xff]
        %v1504 = vld [vmem:[#allocation3 + $0x29] sm:$0xff]
        %v1505 = vpack.c.bf16 %v1499, %v1499
        %v1506 = vpack.c.bf16 %v1500, %v1500
        %v1507 = vpack.c.bf16 %v1501, %v1501
        %v1508 = vpack.c.bf16 %v1502, %v1502
        %v1509 = vpack.c.bf16 %v1503, %v1503
        %v1510 = vpack.c.bf16 %v1504, %v1504
        %v1511 = vld [vmem:[#allocation3 + $0x2] sm:$0xff]
        %v1512 = vld [vmem:[#allocation3 + $0xa] sm:$0xff]
        %v1513 = vld [vmem:[#allocation3 + $0x12] sm:$0xff]
        %v1514 = vld [vmem:[#allocation3 + $0x1a] sm:$0xff]
        %v1515 = vld [vmem:[#allocation3 + $0x22] sm:$0xff]
        %v1516 = vld [vmem:[#allocation3 + $0x2a] sm:$0xff]
        %v1517 = vmul.f32 %v1511, %v496
        %v1518 = vmul.f32 %v1512, %v500
        %v1519 = vmul.f32 %v1513, %v504
        %v1520 = vmul.f32 %v1514, %v508
        %v1521 = vmul.f32 %v1515, %v512
        %v1522 = vmul.f32 %v1516, %v516
        %v1523 = vpack.c.bf16 %v1517, %v1517
        %v1524 = vpack.c.bf16 %v1518, %v1518
        %v1525 = vpack.c.bf16 %v1519, %v1519
        %v1526 = vpack.c.bf16 %v1520, %v1520
        %v1527 = vpack.c.bf16 %v1521, %v1521
        %v1528 = vpack.c.bf16 %v1522, %v1522
        %v1535 = vunpack.c.l.b16 %v1493
        %v1536 = vunpack.c.l.b16 %v1494
        %v1537 = vunpack.c.l.b16 %v1495
        %v1538 = vunpack.c.l.b16 %v1496
        %v1539 = vunpack.c.l.b16 %v1497
        %v1540 = vunpack.c.l.b16 %v1498
        %v1541 = vpack.c.b16 %v1536, %v1535
        %v1542 = vpack.c.b16 %v1538, %v1537
        %v1543 = vpack.c.b16 %v1540, %v1539
        %v1553 = vunpack.c.l.b16 %v1505
        %v1554 = vunpack.c.l.b16 %v1506
        %v1555 = vunpack.c.l.b16 %v1507
        %v1556 = vunpack.c.l.b16 %v1508
        %v1557 = vunpack.c.l.b16 %v1509
        %v1558 = vunpack.c.l.b16 %v1510
        %v1559 = vpack.c.b16 %v1554, %v1553
        %v1560 = vpack.c.b16 %v1556, %v1555
        %v1561 = vpack.c.b16 %v1558, %v1557
        %v1571 = vunpack.c.l.b16 %v1523
        %v1572 = vunpack.c.l.b16 %v1524
        %v1573 = vunpack.c.l.b16 %v1525
        %v1574 = vunpack.c.l.b16 %v1526
        %v1575 = vunpack.c.l.b16 %v1527
        %v1576 = vunpack.c.l.b16 %v1528
        %v1577 = vpack.c.b16 %v1572, %v1571
        %v1578 = vpack.c.b16 %v1574, %v1573
        %v1579 = vpack.c.b16 %v1576, %v1575
        %v1583 = vrot.slane %v1541, 4
        %v1584 = vrot.slane %v1542, 4
        %v1585 = vsel %vm584, %v1583, %v1584
        %v1586 = vrot.slane %v1559, 4
        %v1587 = vrot.slane %v1560, 4
        %v1588 = vsel %vm584, %v1586, %v1587
        %v1589 = vrot.slane %v1577, 4
        %v1590 = vrot.slane %v1578, 4
        %v1591 = vsel %vm584, %v1589, %v1590
        %v1592 = vrot.slane %v1543, 4
        %v1593 = vsel %vm584, %v1584, %v1592
        %v1594 = vrot.slane %v1561, 4
        %v1595 = vsel %vm584, %v1587, %v1594
        %v1596 = vrot.slane %v1579, 4
        %v1597 = vsel %vm584, %v1590, %v1596
        %v1604 = vld [vmem:[#allocation9] sm:$0xf]
        %v1605 = vld [vmem:[#allocation9 + $0x4] sm:$0xf]
        %v1606 = vld [vmem:[#allocation9 + $0x8] sm:$0xf]
        %v1607 = vld [vmem:[#allocation9 + $0xc] sm:$0xf]
        %v1608 = vld [vmem:[#allocation9 + $0x10] sm:$0xf]
        %v1609 = vld [vmem:[#allocation9 + $0x14] sm:$0xf]
        %v1610 = vld [vmem:[#allocation9 + $0x18] sm:$0xf]
        %v1611 = vld [vmem:[#allocation9 + $0x1c] sm:$0xf]
        %v1612 = vld [vmem:[#allocation9 + $0x20] sm:$0xf]
        %v1613 = vld [vmem:[#allocation9 + $0x24] sm:$0xf]
        %v1614 = vld [vmem:[#allocation9 + $0x28] sm:$0xf]
        %v1615 = vld [vmem:[#allocation9 + $0x2c] sm:$0xf]
        %v1616 = vld [vmem:[#allocation9 + $0x30] sm:$0xf]
        %v1617 = vld [vmem:[#allocation9 + $0x34] sm:$0xf]
        %v1618 = vld [vmem:[#allocation9 + $0x38] sm:$0xf]
        %v1619 = vld [vmem:[#allocation9 + $0x3c] sm:$0xf]
        %v1620 = vld [vmem:[#allocation9 + $0x40] sm:$0xf]
        %v1621 = vld [vmem:[#allocation9 + $0x44] sm:$0xf]
        %v1622 = vld [vmem:[#allocation9 + $0x48] sm:$0xf]
        %v1623 = vld [vmem:[#allocation9 + $0x4c] sm:$0xf]
        %v1624 = vld [vmem:[#allocation9 + $0x50] sm:$0xf]
        %v1625 = vld [vmem:[#allocation9 + $0x54] sm:$0xf]
        %v1626 = vld [vmem:[#allocation9 + $0x58] sm:$0xf]
        %v1627 = vld [vmem:[#allocation9 + $0x5c] sm:$0xf]
        %v1628 = vld [vmem:[#allocation9 + $0x60] sm:$0xf]
        %v1629 = vld [vmem:[#allocation9 + $0x64] sm:$0xf]
        %v1630 = vld [vmem:[#allocation9 + $0x68] sm:$0xf]
        %v1631 = vld [vmem:[#allocation9 + $0x6c] sm:$0xf]
        %v1632 = vld [vmem:[#allocation9 + $0x70] sm:$0xf]
        %v1633 = vld [vmem:[#allocation9 + $0x74] sm:$0xf]
        %v1634 = vld [vmem:[#allocation9 + $0x78] sm:$0xf]
        %v1635 = vld [vmem:[#allocation9 + $0x7c] sm:$0xf]
        %v1636 = vld [vmem:[#allocation9 + $0x80] sm:$0xf]
        %v1637 = vld [vmem:[#allocation9 + $0x84] sm:$0xf]
        %v1638 = vld [vmem:[#allocation9 + $0x88] sm:$0xf]
        %v1639 = vld [vmem:[#allocation9 + $0x8c] sm:$0xf]
        %v1640 = vld [vmem:[#allocation9 + $0x90] sm:$0xf]
        %v1641 = vld [vmem:[#allocation9 + $0x94] sm:$0xf]
        %v1642 = vld [vmem:[#allocation9 + $0x98] sm:$0xf]
        %v1643 = vld [vmem:[#allocation9 + $0x9c] sm:$0xf]
        %v1644 = vld [vmem:[#allocation9 + $0xa0] sm:$0xf]
        %v1645 = vld [vmem:[#allocation9 + $0xa4] sm:$0xf]
        %v1646 = vld [vmem:[#allocation9 + $0xa8] sm:$0xf]
        %v1647 = vld [vmem:[#allocation9 + $0xac] sm:$0xf]
        %v1648 = vld [vmem:[#allocation9 + $0xb0] sm:$0xf]
        %v1649 = vld [vmem:[#allocation9 + $0xb4] sm:$0xf]
        %v1650 = vld [vmem:[#allocation9 + $0xb8] sm:$0xf]
        %v1651 = vld [vmem:[#allocation9 + $0xbc] sm:$0xf]
        %v1652 = vld [vmem:[#allocation9 + $0xc0] sm:$0xf]
        %v1653 = vld [vmem:[#allocation9 + $0xc4] sm:$0xf]
        %v1654 = vld [vmem:[#allocation9 + $0xc8] sm:$0xf]
        %v1655 = vld [vmem:[#allocation9 + $0xcc] sm:$0xf]
        %v1656 = vld [vmem:[#allocation9 + $0xd0] sm:$0xf]
        %v1657 = vld [vmem:[#allocation9 + $0xd4] sm:$0xf]
        %v1658 = vld [vmem:[#allocation9 + $0xd8] sm:$0xf]
        %v1659 = vld [vmem:[#allocation9 + $0xdc] sm:$0xf]
        %v1660 = vld [vmem:[#allocation9 + $0xe0] sm:$0xf]
        %v1661 = vld [vmem:[#allocation9 + $0xe4] sm:$0xf]
        %v1662 = vld [vmem:[#allocation9 + $0xe8] sm:$0xf]
        %v1663 = vld [vmem:[#allocation9 + $0xec] sm:$0xf]
        %v1664 = vld [vmem:[#allocation9 + $0xf0] sm:$0xf]
        %v1665 = vld [vmem:[#allocation9 + $0xf4] sm:$0xf]
        %v1666 = vld [vmem:[#allocation9 + $0xf8] sm:$0xf]
        %v1667 = vld [vmem:[#allocation9 + $0xfc] sm:$0xf]
        %v1668 = vld [vmem:[#allocation9 + $0x100] sm:$0xf]
        %v1669 = vld [vmem:[#allocation9 + $0x104] sm:$0xf]
        %v1670 = vld [vmem:[#allocation9 + $0x108] sm:$0xf]
        %v1671 = vld [vmem:[#allocation9 + $0x10c] sm:$0xf]
        %v1672 = vld [vmem:[#allocation9 + $0x110] sm:$0xf]
        %v1673 = vld [vmem:[#allocation9 + $0x114] sm:$0xf]
        %v1674 = vld [vmem:[#allocation9 + $0x118] sm:$0xf]
        %v1675 = vld [vmem:[#allocation9 + $0x11c] sm:$0xf]
        %v1676 = vld [vmem:[#allocation9 + $0x120] sm:$0xf]
        %v1677 = vld [vmem:[#allocation9 + $0x124] sm:$0xf]
        %v1678 = vld [vmem:[#allocation9 + $0x128] sm:$0xf]
        %v1679 = vld [vmem:[#allocation9 + $0x12c] sm:$0xf]
        %v1680 = vld [vmem:[#allocation9 + $0x130] sm:$0xf]
        %v1681 = vld [vmem:[#allocation9 + $0x134] sm:$0xf]
        %v1682 = vld [vmem:[#allocation9 + $0x138] sm:$0xf]
        %v1683 = vld [vmem:[#allocation9 + $0x13c] sm:$0xf]
        %v1684 = vld [vmem:[#allocation9 + $0x140] sm:$0xf]
        %v1685 = vld [vmem:[#allocation9 + $0x144] sm:$0xf]
        %v1686 = vld [vmem:[#allocation9 + $0x148] sm:$0xf]
        %v1687 = vld [vmem:[#allocation9 + $0x14c] sm:$0xf]
        %v1688 = vld [vmem:[#allocation9 + $0x150] sm:$0xf]
        %v1689 = vld [vmem:[#allocation9 + $0x154] sm:$0xf]
        %v1690 = vld [vmem:[#allocation9 + $0x158] sm:$0xf]
        %v1691 = vld [vmem:[#allocation9 + $0x15c] sm:$0xf]
        %v1692 = vld [vmem:[#allocation9 + $0x160] sm:$0xf]
        %v1693 = vld [vmem:[#allocation9 + $0x164] sm:$0xf]
        %v1694 = vld [vmem:[#allocation9 + $0x168] sm:$0xf]
        %v1695 = vld [vmem:[#allocation9 + $0x16c] sm:$0xf]
        %v1696 = vld [vmem:[#allocation9 + $0x170] sm:$0xf]
        %v1697 = vld [vmem:[#allocation9 + $0x174] sm:$0xf]
        %v1698 = vld [vmem:[#allocation9 + $0x178] sm:$0xf]
        %v1699 = vld [vmem:[#allocation9 + $0x17c] sm:$0xf]
        %v1700 = vld [vmem:[#allocation9 + $0x180] sm:$0xf]
        %v1701 = vld [vmem:[#allocation9 + $0x184] sm:$0xf]
        %v1702 = vld [vmem:[#allocation9 + $0x188] sm:$0xf]
        %v1703 = vld [vmem:[#allocation9 + $0x18c] sm:$0xf]
        %v1704 = vld [vmem:[#allocation9 + $0x190] sm:$0xf]
        %v1705 = vld [vmem:[#allocation9 + $0x194] sm:$0xf]
        %v1706 = vld [vmem:[#allocation9 + $0x198] sm:$0xf]
        %v1707 = vld [vmem:[#allocation9 + $0x19c] sm:$0xf]
        %v1708 = vld [vmem:[#allocation9 + $0x1a0] sm:$0xf]
        %v1709 = vld [vmem:[#allocation9 + $0x1a4] sm:$0xf]
        %v1710 = vld [vmem:[#allocation9 + $0x1a8] sm:$0xf]
        %v1711 = vld [vmem:[#allocation9 + $0x1ac] sm:$0xf]
        %v1712 = vld [vmem:[#allocation9 + $0x1b0] sm:$0xf]
        %v1713 = vld [vmem:[#allocation9 + $0x1b4] sm:$0xf]
        %v1714 = vld [vmem:[#allocation9 + $0x1b8] sm:$0xf]
        %v1715 = vld [vmem:[#allocation9 + $0x1bc] sm:$0xf]
        %v1716 = vld [vmem:[#allocation9 + $0x1c0] sm:$0xf]
        %v1717 = vld [vmem:[#allocation9 + $0x1c4] sm:$0xf]
        %v1718 = vld [vmem:[#allocation9 + $0x1c8] sm:$0xf]
        %v1719 = vld [vmem:[#allocation9 + $0x1cc] sm:$0xf]
        %v1720 = vld [vmem:[#allocation9 + $0x1d0] sm:$0xf]
        %v1721 = vld [vmem:[#allocation9 + $0x1d4] sm:$0xf]
        %v1722 = vld [vmem:[#allocation9 + $0x1d8] sm:$0xf]
        %v1723 = vld [vmem:[#allocation9 + $0x1dc] sm:$0xf]
        %v1724 = vld [vmem:[#allocation9 + $0x1e0] sm:$0xf]
        %v1725 = vld [vmem:[#allocation9 + $0x1e4] sm:$0xf]
        %v1726 = vld [vmem:[#allocation9 + $0x1e8] sm:$0xf]
        %v1727 = vld [vmem:[#allocation9 + $0x1ec] sm:$0xf]
        %v1728 = vld [vmem:[#allocation9 + $0x1f0] sm:$0xf]
        %v1729 = vld [vmem:[#allocation9 + $0x1f4] sm:$0xf]
        %v1730 = vld [vmem:[#allocation9 + $0x1f8] sm:$0xf]
        %v1731 = vld [vmem:[#allocation9 + $0x1fc] sm:$0xf]
        %v1732 = vld [vmem:[#allocation9 + $0x200] sm:$0xf]
        %v1733 = vld [vmem:[#allocation9 + $0x204] sm:$0xf]
        %v1734 = vld [vmem:[#allocation9 + $0x208] sm:$0xf]
        %v1735 = vld [vmem:[#allocation9 + $0x20c] sm:$0xf]
        %v1736 = vld [vmem:[#allocation9 + $0x210] sm:$0xf]
        %v1737 = vld [vmem:[#allocation9 + $0x214] sm:$0xf]
        %v1738 = vld [vmem:[#allocation9 + $0x218] sm:$0xf]
        %v1739 = vld [vmem:[#allocation9 + $0x21c] sm:$0xf]
        %v1740 = vld [vmem:[#allocation9 + $0x220] sm:$0xf]
        %v1741 = vld [vmem:[#allocation9 + $0x224] sm:$0xf]
        %v1742 = vld [vmem:[#allocation9 + $0x228] sm:$0xf]
        %v1743 = vld [vmem:[#allocation9 + $0x22c] sm:$0xf]
        %v1744 = vld [vmem:[#allocation9 + $0x230] sm:$0xf]
        %v1745 = vld [vmem:[#allocation9 + $0x234] sm:$0xf]
        %v1746 = vld [vmem:[#allocation9 + $0x238] sm:$0xf]
        %v1747 = vld [vmem:[#allocation9 + $0x23c] sm:$0xf]
        %v1892 = vunpack.c.l.b16 %v1604
        %v1893 = vunpack.c.l.b16 %v1605
        %v1894 = vunpack.c.l.b16 %v1606
        %v1895 = vunpack.c.l.b16 %v1607
        %v1896 = vunpack.c.l.b16 %v1608
        %v1897 = vunpack.c.l.b16 %v1609
        %v1898 = vunpack.c.l.b16 %v1610
        %v1899 = vunpack.c.l.b16 %v1611
        %v1900 = vunpack.c.l.b16 %v1612
        %v1901 = vunpack.c.l.b16 %v1613
        %v1902 = vunpack.c.l.b16 %v1614
        %v1903 = vunpack.c.l.b16 %v1615
        %v1904 = vunpack.c.l.b16 %v1616
        %v1905 = vunpack.c.l.b16 %v1617
        %v1906 = vunpack.c.l.b16 %v1618
        %v1907 = vunpack.c.l.b16 %v1619
        %v1908 = vunpack.c.l.b16 %v1620
        %v1909 = vunpack.c.l.b16 %v1621
        %v1910 = vunpack.c.l.b16 %v1622
        %v1911 = vunpack.c.l.b16 %v1623
        %v1912 = vunpack.c.l.b16 %v1624
        %v1913 = vunpack.c.l.b16 %v1625
        %v1914 = vunpack.c.l.b16 %v1626
        %v1915 = vunpack.c.l.b16 %v1627
        %v1916 = vunpack.c.l.b16 %v1628
        %v1917 = vunpack.c.l.b16 %v1629
        %v1918 = vunpack.c.l.b16 %v1630
        %v1919 = vunpack.c.l.b16 %v1631
        %v1920 = vunpack.c.l.b16 %v1632
        %v1921 = vunpack.c.l.b16 %v1633
        %v1922 = vunpack.c.l.b16 %v1634
        %v1923 = vunpack.c.l.b16 %v1635
        %v1924 = vunpack.c.l.b16 %v1636
        %v1925 = vunpack.c.l.b16 %v1637
        %v1926 = vunpack.c.l.b16 %v1638
        %v1927 = vunpack.c.l.b16 %v1639
        %v1928 = vunpack.c.l.b16 %v1640
        %v1929 = vunpack.c.l.b16 %v1641
        %v1930 = vunpack.c.l.b16 %v1642
        %v1931 = vunpack.c.l.b16 %v1643
        %v1932 = vunpack.c.l.b16 %v1644
        %v1933 = vunpack.c.l.b16 %v1645
        %v1934 = vunpack.c.l.b16 %v1646
        %v1935 = vunpack.c.l.b16 %v1647
        %v1936 = vunpack.c.l.b16 %v1648
        %v1937 = vunpack.c.l.b16 %v1649
        %v1938 = vunpack.c.l.b16 %v1650
        %v1939 = vunpack.c.l.b16 %v1651
        %v1940 = vunpack.c.l.b16 %v1652
        %v1941 = vunpack.c.l.b16 %v1653
        %v1942 = vunpack.c.l.b16 %v1654
        %v1943 = vunpack.c.l.b16 %v1655
        %v1944 = vunpack.c.l.b16 %v1656
        %v1945 = vunpack.c.l.b16 %v1657
        %v1946 = vunpack.c.l.b16 %v1658
        %v1947 = vunpack.c.l.b16 %v1659
        %v1948 = vunpack.c.l.b16 %v1660
        %v1949 = vunpack.c.l.b16 %v1661
        %v1950 = vunpack.c.l.b16 %v1662
        %v1951 = vunpack.c.l.b16 %v1663
        %v1952 = vunpack.c.l.b16 %v1664
        %v1953 = vunpack.c.l.b16 %v1665
        %v1954 = vunpack.c.l.b16 %v1666
        %v1955 = vunpack.c.l.b16 %v1667
        %v1956 = vunpack.c.l.b16 %v1668
        %v1957 = vunpack.c.l.b16 %v1669
        %v1958 = vunpack.c.l.b16 %v1670
        %v1959 = vunpack.c.l.b16 %v1671
        %v1960 = vunpack.c.l.b16 %v1672
        %v1961 = vunpack.c.l.b16 %v1673
        %v1962 = vunpack.c.l.b16 %v1674
        %v1963 = vunpack.c.l.b16 %v1675
        %v1964 = vunpack.c.l.b16 %v1676
        %v1965 = vunpack.c.l.b16 %v1677
        %v1966 = vunpack.c.l.b16 %v1678
        %v1967 = vunpack.c.l.b16 %v1679
        %v1968 = vunpack.c.l.b16 %v1680
        %v1969 = vunpack.c.l.b16 %v1681
        %v1970 = vunpack.c.l.b16 %v1682
        %v1971 = vunpack.c.l.b16 %v1683
        %v1972 = vunpack.c.l.b16 %v1684
        %v1973 = vunpack.c.l.b16 %v1685
        %v1974 = vunpack.c.l.b16 %v1686
        %v1975 = vunpack.c.l.b16 %v1687
        %v1976 = vunpack.c.l.b16 %v1688
        %v1977 = vunpack.c.l.b16 %v1689
        %v1978 = vunpack.c.l.b16 %v1690
        %v1979 = vunpack.c.l.b16 %v1691
        %v1980 = vunpack.c.l.b16 %v1692
        %v1981 = vunpack.c.l.b16 %v1693
        %v1982 = vunpack.c.l.b16 %v1694
        %v1983 = vunpack.c.l.b16 %v1695
        %v1984 = vunpack.c.l.b16 %v1696
        %v1985 = vunpack.c.l.b16 %v1697
        %v1986 = vunpack.c.l.b16 %v1698
        %v1987 = vunpack.c.l.b16 %v1699
        %v1988 = vunpack.c.l.b16 %v1700
        %v1989 = vunpack.c.l.b16 %v1701
        %v1990 = vunpack.c.l.b16 %v1702
        %v1991 = vunpack.c.l.b16 %v1703
        %v1992 = vunpack.c.l.b16 %v1704
        %v1993 = vunpack.c.l.b16 %v1705
        %v1994 = vunpack.c.l.b16 %v1706
        %v1995 = vunpack.c.l.b16 %v1707
        %v1996 = vunpack.c.l.b16 %v1708
        %v1997 = vunpack.c.l.b16 %v1709
        %v1998 = vunpack.c.l.b16 %v1710
        %v1999 = vunpack.c.l.b16 %v1711
        %v2000 = vunpack.c.l.b16 %v1712
        %v2001 = vunpack.c.l.b16 %v1713
        %v2002 = vunpack.c.l.b16 %v1714
        %v2003 = vunpack.c.l.b16 %v1715
        %v2004 = vunpack.c.l.b16 %v1716
        %v2005 = vunpack.c.l.b16 %v1717
        %v2006 = vunpack.c.l.b16 %v1718
        %v2007 = vunpack.c.l.b16 %v1719
        %v2008 = vunpack.c.l.b16 %v1720
        %v2009 = vunpack.c.l.b16 %v1721
        %v2010 = vunpack.c.l.b16 %v1722
        %v2011 = vunpack.c.l.b16 %v1723
        %v2012 = vunpack.c.l.b16 %v1724
        %v2013 = vunpack.c.l.b16 %v1725
        %v2014 = vunpack.c.l.b16 %v1726
        %v2015 = vunpack.c.l.b16 %v1727
        %v2016 = vunpack.c.l.b16 %v1728
        %v2017 = vunpack.c.l.b16 %v1729
        %v2018 = vunpack.c.l.b16 %v1730
        %v2019 = vunpack.c.l.b16 %v1731
        %v2020 = vunpack.c.l.b16 %v1732
        %v2021 = vunpack.c.l.b16 %v1733
        %v2022 = vunpack.c.l.b16 %v1734
        %v2023 = vunpack.c.l.b16 %v1735
        %v2024 = vunpack.c.l.b16 %v1736
        %v2025 = vunpack.c.l.b16 %v1737
        %v2026 = vunpack.c.l.b16 %v1738
        %v2027 = vunpack.c.l.b16 %v1739
        %v2028 = vunpack.c.l.b16 %v1740
        %v2029 = vunpack.c.l.b16 %v1741
        %v2030 = vunpack.c.l.b16 %v1742
        %v2031 = vunpack.c.l.b16 %v1743
        %v2032 = vunpack.c.l.b16 %v1744
        %v2033 = vunpack.c.l.b16 %v1745
        %v2034 = vunpack.c.l.b16 %v1746
        %v2035 = vunpack.c.l.b16 %v1747
        %v2036 = vpack.c.b16 %v1893, %v1892
        %v2037 = vpack.c.b16 %v1895, %v1894
        %v2038 = vpack.c.b16 %v1897, %v1896
        %v2039 = vpack.c.b16 %v1899, %v1898
        %v2040 = vpack.c.b16 %v1901, %v1900
        %v2041 = vpack.c.b16 %v1903, %v1902
        %v2042 = vpack.c.b16 %v1905, %v1904
        %v2043 = vpack.c.b16 %v1907, %v1906
        %v2044 = vpack.c.b16 %v1909, %v1908
        %v2045 = vpack.c.b16 %v1911, %v1910
        %v2046 = vpack.c.b16 %v1913, %v1912
        %v2047 = vpack.c.b16 %v1915, %v1914
        %v2048 = vpack.c.b16 %v1917, %v1916
        %v2049 = vpack.c.b16 %v1919, %v1918
        %v2050 = vpack.c.b16 %v1921, %v1920
        %v2051 = vpack.c.b16 %v1923, %v1922
        %v2052 = vpack.c.b16 %v1925, %v1924
        %v2053 = vpack.c.b16 %v1927, %v1926
        %v2054 = vpack.c.b16 %v1929, %v1928
        %v2055 = vpack.c.b16 %v1931, %v1930
        %v2056 = vpack.c.b16 %v1933, %v1932
        %v2057 = vpack.c.b16 %v1935, %v1934
        %v2058 = vpack.c.b16 %v1937, %v1936
        %v2059 = vpack.c.b16 %v1939, %v1938
        %v2060 = vpack.c.b16 %v1941, %v1940
        %v2061 = vpack.c.b16 %v1943, %v1942
        %v2062 = vpack.c.b16 %v1945, %v1944
        %v2063 = vpack.c.b16 %v1947, %v1946
        %v2064 = vpack.c.b16 %v1949, %v1948
        %v2065 = vpack.c.b16 %v1951, %v1950
        %v2066 = vpack.c.b16 %v1953, %v1952
        %v2067 = vpack.c.b16 %v1955, %v1954
        %v2068 = vpack.c.b16 %v1957, %v1956
        %v2069 = vpack.c.b16 %v1959, %v1958
        %v2070 = vpack.c.b16 %v1961, %v1960
        %v2071 = vpack.c.b16 %v1963, %v1962
        %v2072 = vpack.c.b16 %v1965, %v1964
        %v2073 = vpack.c.b16 %v1967, %v1966
        %v2074 = vpack.c.b16 %v1969, %v1968
        %v2075 = vpack.c.b16 %v1971, %v1970
        %v2076 = vpack.c.b16 %v1973, %v1972
        %v2077 = vpack.c.b16 %v1975, %v1974
        %v2078 = vpack.c.b16 %v1977, %v1976
        %v2079 = vpack.c.b16 %v1979, %v1978
        %v2080 = vpack.c.b16 %v1981, %v1980
        %v2081 = vpack.c.b16 %v1983, %v1982
        %v2082 = vpack.c.b16 %v1985, %v1984
        %v2083 = vpack.c.b16 %v1987, %v1986
        %v2084 = vpack.c.b16 %v1989, %v1988
        %v2085 = vpack.c.b16 %v1991, %v1990
        %v2086 = vpack.c.b16 %v1993, %v1992
        %v2087 = vpack.c.b16 %v1995, %v1994
        %v2088 = vpack.c.b16 %v1997, %v1996
        %v2089 = vpack.c.b16 %v1999, %v1998
        %v2090 = vpack.c.b16 %v2001, %v2000
        %v2091 = vpack.c.b16 %v2003, %v2002
        %v2092 = vpack.c.b16 %v2005, %v2004
        %v2093 = vpack.c.b16 %v2007, %v2006
        %v2094 = vpack.c.b16 %v2009, %v2008
        %v2095 = vpack.c.b16 %v2011, %v2010
        %v2096 = vpack.c.b16 %v2013, %v2012
        %v2097 = vpack.c.b16 %v2015, %v2014
        %v2098 = vpack.c.b16 %v2017, %v2016
        %v2099 = vpack.c.b16 %v2019, %v2018
        %v2100 = vpack.c.b16 %v2021, %v2020
        %v2101 = vpack.c.b16 %v2023, %v2022
        %v2102 = vpack.c.b16 %v2025, %v2024
        %v2103 = vpack.c.b16 %v2027, %v2026
        %v2104 = vpack.c.b16 %v2029, %v2028
        %v2105 = vpack.c.b16 %v2031, %v2030
        %v2106 = vpack.c.b16 %v2033, %v2032
        %v2107 = vpack.c.b16 %v2035, %v2034
        %2180 = vmatpush.bf16.msra.mxu0 %v2043
        %2181 = vmatpush.bf16.msra.mxu0 %v2042
        %2182 = vmatpush.bf16.msra.mxu0 %v2041
        %2183 = vmatpush.bf16.msra.mxu0 %v2040
        %2184 = vmatpush.bf16.msra.mxu0 %v2039
        %2185 = vmatpush.bf16.msra.mxu0 %v2038
        %2186 = vmatpush.bf16.msra.mxu0 %v2037
        %2187 = vmatpush.bf16.msra.mxu0 %v2036
        %2188 = vmatmul.bf16.gmra.mxu0 %v1541
        %v2189 = vpop.f32.mrf.mxu0
        %v2190 = vadd.f32 0.0, %v2189
        %v2191 = vpop.f32.mrf.mxu0
        %v2192 = vadd.f32 0.0, %v2191
        %2193 = vmatmul.bf16.gmra.mxu0 %v1542
        %v2194 = vpop.f32.mrf.mxu0
        %v2195 = vadd.f32 0.0, %v2194
        %v2196 = vpop.f32.mrf.mxu0
        %v2197 = vadd.f32 0.0, %v2196
        %2198 = vdwg.mxu0
        %2199 = vmatpush.bf16.msra.mxu0 %v2051
        %2200 = vmatpush.bf16.msra.mxu0 %v2050
        %2201 = vmatpush.bf16.msra.mxu0 %v2049
        %2202 = vmatpush.bf16.msra.mxu0 %v2048
        %2203 = vmatpush.bf16.msra.mxu0 %v2047
        %2204 = vmatpush.bf16.msra.mxu0 %v2046
        %2205 = vmatpush.bf16.msra.mxu0 %v2045
        %2206 = vmatpush.bf16.msra.mxu0 %v2044
        %2207 = vmatmul.bf16.gmra.mxu0 %v1559
        %v2208 = vpop.f32.mrf.mxu0
        %v2209 = vadd.f32 %v2190, %v2208
        %v2210 = vpop.f32.mrf.mxu0
        %v2211 = vadd.f32 %v2192, %v2210
        %2212 = vmatmul.bf16.gmra.mxu0 %v1560
        %v2213 = vpop.f32.mrf.mxu0
        %v2214 = vadd.f32 %v2195, %v2213
        %v2215 = vpop.f32.mrf.mxu0
        %v2216 = vadd.f32 %v2197, %v2215
        %2217 = vdwg.mxu0
        %2218 = vmatpush.bf16.msra.mxu0 %v2059
        %2219 = vmatpush.bf16.msra.mxu0 %v2058
        %2220 = vmatpush.bf16.msra.mxu0 %v2057
        %2221 = vmatpush.bf16.msra.mxu0 %v2056
        %2222 = vmatpush.bf16.msra.mxu0 %v2055
        %2223 = vmatpush.bf16.msra.mxu0 %v2054
        %2224 = vmatpush.bf16.msra.mxu0 %v2053
        %2225 = vmatpush.bf16.msra.mxu0 %v2052
        %2226 = vmatmul.bf16.gmra.mxu0 %v1577
        %v2227 = vpop.f32.mrf.mxu0
        %v2228 = vadd.f32 %v2209, %v2227
        %v2229 = vpop.f32.mrf.mxu0
        %v2230 = vadd.f32 %v2211, %v2229
        %2231 = vmatmul.bf16.gmra.mxu0 %v1578
        %v2232 = vpop.f32.mrf.mxu0
        %v2233 = vadd.f32 %v2214, %v2232
        %v2234 = vpop.f32.mrf.mxu0
        %v2235 = vadd.f32 %v2216, %v2234
        %2236 = vdwg.mxu0
        %2237 = vmatpush.bf16.msra.mxu0 %v2067
        %2238 = vmatpush.bf16.msra.mxu0 %v2066
        %2239 = vmatpush.bf16.msra.mxu0 %v2065
        %2240 = vmatpush.bf16.msra.mxu0 %v2064
        %2241 = vmatpush.bf16.msra.mxu0 %v2063
        %2242 = vmatpush.bf16.msra.mxu0 %v2062
        %2243 = vmatpush.bf16.msra.mxu0 %v2061
        %2244 = vmatpush.bf16.msra.mxu0 %v2060
        %2245 = vmatmul.bf16.gmra.mxu0 %v1585
        %v2246 = vpop.f32.mrf.mxu0
        %v2247 = vadd.f32 %v2228, %v2246
        %v2248 = vpop.f32.mrf.mxu0
        %v2249 = vadd.f32 %v2230, %v2248
        %2250 = vmatmul.bf16.gmra.mxu0 %v1593
        %v2251 = vpop.f32.mrf.mxu0
        %v2252 = vadd.f32 %v2233, %v2251
        %v2253 = vpop.f32.mrf.mxu0
        %v2254 = vadd.f32 %v2235, %v2253
        %2255 = vdwg.mxu0
        %2256 = vmatpush.bf16.msra.mxu0 %v2075
        %2257 = vmatpush.bf16.msra.mxu0 %v2074
        %2258 = vmatpush.bf16.msra.mxu0 %v2073
        %2259 = vmatpush.bf16.msra.mxu0 %v2072
        %2260 = vmatpush.bf16.msra.mxu0 %v2071
        %2261 = vmatpush.bf16.msra.mxu0 %v2070
        %2262 = vmatpush.bf16.msra.mxu0 %v2069
        %2263 = vmatpush.bf16.msra.mxu0 %v2068
        %2264 = vmatmul.bf16.gmra.mxu0 %v1588
        %v2265 = vpop.f32.mrf.mxu0
        %v2266 = vadd.f32 %v2247, %v2265
        %v2267 = vpop.f32.mrf.mxu0
        %v2268 = vadd.f32 %v2249, %v2267
        %2269 = vmatmul.bf16.gmra.mxu0 %v1595
        %v2270 = vpop.f32.mrf.mxu0
        %v2271 = vadd.f32 %v2252, %v2270
        %v2272 = vpop.f32.mrf.mxu0
        %v2273 = vadd.f32 %v2254, %v2272
        %2274 = vdwg.mxu0
        %2275 = vmatpush.bf16.msra.mxu0 %v2083
        %2276 = vmatpush.bf16.msra.mxu0 %v2082
        %2277 = vmatpush.bf16.msra.mxu0 %v2081
        %2278 = vmatpush.bf16.msra.mxu0 %v2080
        %2279 = vmatpush.bf16.msra.mxu0 %v2079
        %2280 = vmatpush.bf16.msra.mxu0 %v2078
        %2281 = vmatpush.bf16.msra.mxu0 %v2077
        %2282 = vmatpush.bf16.msra.mxu0 %v2076
        %2283 = vmatmul.bf16.gmra.mxu0 %v1591
        %v2284 = vpop.f32.mrf.mxu0
        %v2285 = vadd.f32 %v2266, %v2284
        %v2286 = vpop.f32.mrf.mxu0
        %v2287 = vadd.f32 %v2268, %v2286
        %2288 = vmatmul.bf16.gmra.mxu0 %v1597
        %v2289 = vpop.f32.mrf.mxu0
        %v2290 = vadd.f32 %v2271, %v2289
        %v2291 = vpop.f32.mrf.mxu0
        %v2292 = vadd.f32 %v2273, %v2291
        %2293 = vdwg.mxu0
        %2294 = vmatpush.bf16.msra.mxu0 %v2091
        %2295 = vmatpush.bf16.msra.mxu0 %v2090
        %2296 = vmatpush.bf16.msra.mxu0 %v2089
        %2297 = vmatpush.bf16.msra.mxu0 %v2088
        %2298 = vmatpush.bf16.msra.mxu0 %v2087
        %2299 = vmatpush.bf16.msra.mxu0 %v2086
        %2300 = vmatpush.bf16.msra.mxu0 %v2085
        %2301 = vmatpush.bf16.msra.mxu0 %v2084
        %2302 = vmatmul.bf16.gmra.mxu0 %v1542
        %v2303 = vpop.f32.mrf.mxu0
        %v2304 = vadd.f32 %v2285, %v2303
        %v2305 = vpop.f32.mrf.mxu0
        %v2306 = vadd.f32 %v2287, %v2305
        %2307 = vmatmul.bf16.gmra.mxu0 %v1543
        %v2308 = vpop.f32.mrf.mxu0
        %v2309 = vadd.f32 %v2290, %v2308
        %v2310 = vpop.f32.mrf.mxu0
        %v2311 = vadd.f32 %v2292, %v2310
        %2312 = vdwg.mxu0
        %2313 = vmatpush.bf16.msra.mxu0 %v2099
        %2314 = vmatpush.bf16.msra.mxu0 %v2098
        %2315 = vmatpush.bf16.msra.mxu0 %v2097
        %2316 = vmatpush.bf16.msra.mxu0 %v2096
        %2317 = vmatpush.bf16.msra.mxu0 %v2095
        %2318 = vmatpush.bf16.msra.mxu0 %v2094
        %2319 = vmatpush.bf16.msra.mxu0 %v2093
        %2320 = vmatpush.bf16.msra.mxu0 %v2092
        %2321 = vmatmul.bf16.gmra.mxu0 %v1560
        %v2322 = vpop.f32.mrf.mxu0
        %v2323 = vadd.f32 %v2304, %v2322
        %v2324 = vpop.f32.mrf.mxu0
        %v2325 = vadd.f32 %v2306, %v2324
        %2326 = vmatmul.bf16.gmra.mxu0 %v1561
        %v2327 = vpop.f32.mrf.mxu0
        %v2328 = vadd.f32 %v2309, %v2327
        %v2329 = vpop.f32.mrf.mxu0
        %v2330 = vadd.f32 %v2311, %v2329
        %2331 = vdwg.mxu0
        %2332 = vmatpush.bf16.msra.mxu0 %v2107
        %2333 = vmatpush.bf16.msra.mxu0 %v2106
        %2334 = vmatpush.bf16.msra.mxu0 %v2105
        %2335 = vmatpush.bf16.msra.mxu0 %v2104
        %2336 = vmatpush.bf16.msra.mxu0 %v2103
        %2337 = vmatpush.bf16.msra.mxu0 %v2102
        %2338 = vmatpush.bf16.msra.mxu0 %v2101
        %2339 = vmatpush.bf16.msra.mxu0 %v2100
        %2340 = vmatmul.bf16.gmra.mxu0 %v1578
        %v2341 = vpop.f32.mrf.mxu0
        %v2342 = vadd.f32 %v2323, %v2341
        %v2343 = vpop.f32.mrf.mxu0
        %v2344 = vadd.f32 %v2325, %v2343
        %2345 = vmatmul.bf16.gmra.mxu0 %v1579
        %v2346 = vpop.f32.mrf.mxu0
        %v2347 = vadd.f32 %v2328, %v2346
        %v2348 = vpop.f32.mrf.mxu0
        %v2349 = vadd.f32 %v2330, %v2348
        %2350 = vdwg.mxu0
        %v2351 = vadd.f32 %v2342, %v2344
        %v2352 = vadd.f32 %v2351, %v2347
        %v2353 = vadd.f32 %v2352, %v2349
        %v2354 = vrot.slane %v2353, 4
        %v2355 = vadd.f32 %v2353, %v2354
        %v2356 = vrot.slane %v2355, 2
        %v2357 = vadd.f32 %v2355, %v2356
        %v2358 = vrot.slane %v2357, 1
        %v2359 = vadd.f32 %v2357, %v2358
        %2360 = vmatpush.msra.mxu0 %v419
        %2361 = vmatpush.msra.mxu0 %v418
        %2362 = vmatpush.msra.mxu0 %v417
        %2363 = vmatpush.msra.mxu0 %v416
        %2364 = vmatpush.msra.mxu0 %v415
        %2365 = vmatpush.msra.mxu0 %v414
        %2366 = vmatpush.msra.mxu0 %v413
        %2367 = vmatpush.msra.mxu0 %v412
        %2368 = vmatpush.msra.mxu0 %v411
        %2369 = vmatpush.msra.mxu0 %v410
        %2370 = vmatpush.msra.mxu0 %v409
        %2371 = vmatpush.msra.mxu0 %v408
        %2372 = vmatpush.msra.mxu0 %v407
        %2373 = vmatpush.msra.mxu0 %v406
        %2374 = vmatpush.msra.mxu0 %v405
        %2375 = vmatpush.msra.mxu0 %v404
        %2376 = vmatmul.f32.gmra.mxu0 %v2359
        %v2377 = vpop.f32.mrf.mxu0
        %v2378 = vadd.f32 0.0, %v2377
        %2379 = vdwg.mxu0
        %v2380 = vperm.slane %v2378, 0
        %v2381 = vsub.f32 %v2342, %v2380
        %v2382 = vsub.f32 %v2344, %v2380
        %v2383 = vsub.f32 %v2347, %v2380
        %v2384 = vsub.f32 %v2349, %v2380
        %v2385 = vmul.f32 %v2381, %v2381
        %v2386 = vmul.f32 %v2382, %v2382
        %v2387 = vmul.f32 %v2383, %v2383
        %v2388 = vmul.f32 %v2384, %v2384
        %v2389 = vadd.f32 %v2385, %v2386
        %v2390 = vadd.f32 %v2389, %v2387
        %v2391 = vadd.f32 %v2390, %v2388
        %v2392 = vrot.slane %v2391, 4
        %v2393 = vadd.f32 %v2391, %v2392
        %v2394 = vrot.slane %v2393, 2
        %v2395 = vadd.f32 %v2393, %v2394
        %v2396 = vrot.slane %v2395, 1
        %v2397 = vadd.f32 %v2395, %v2396
        %2398 = vmatpush.msra.mxu0 %v419
        %2399 = vmatpush.msra.mxu0 %v418
        %2400 = vmatpush.msra.mxu0 %v417
        %2401 = vmatpush.msra.mxu0 %v416
        %2402 = vmatpush.msra.mxu0 %v415
        %2403 = vmatpush.msra.mxu0 %v414
        %2404 = vmatpush.msra.mxu0 %v413
        %2405 = vmatpush.msra.mxu0 %v412
        %2406 = vmatpush.msra.mxu0 %v411
        %2407 = vmatpush.msra.mxu0 %v410
        %2408 = vmatpush.msra.mxu0 %v409
        %2409 = vmatpush.msra.mxu0 %v408
        %2410 = vmatpush.msra.mxu0 %v407
        %2411 = vmatpush.msra.mxu0 %v406
        %2412 = vmatpush.msra.mxu0 %v405
        %2413 = vmatpush.msra.mxu0 %v404
        %2414 = vmatmul.f32.gmra.mxu0 %v2397
        %v2415 = vpop.f32.mrf.mxu0
        %v2416 = vadd.f32 1e-05, %v2415
        %2417 = vdwg.mxu0
        %v2418 = vrsqrt.pop %v2416
        %v2419 = vmul.f32 %v2418, %v2416
        %v2420 = vmul.f32 %v2419, %v2418
        %v2421 = vmul.f32 0.5, %v2420
        %v2422 = vsub.f32 1.5, %v2421
        %v2423 = vmul.f32 %v2418, %v2422
        %vm2424 = vweird.f32 %v2416
        %vm2425 = vweird.f32 %v2418
        %vm2426 = vmor %vm2424, %vm2425
        %v2427 = vsel %vm2426, %v2418, %v2423
        %v2428 = vperm.slane %v2427, 0
        %v2429 = vmul.f32 %v2381, %v2428
        %v2430 = vmul.f32 %v2382, %v2428
        %v2431 = vmul.f32 %v2383, %v2428
        %v2432 = vmul.f32 %v2384, %v2428
        %v2433 = vmul.f32 %v2429, %v1436
        %v2434 = vmul.f32 %v2430, %v1436
        %v2435 = vmul.f32 %v2431, %v1436
        %v2436 = vmul.f32 %v2432, %v1436
        %v2437 = vadd.f32 %v2433, %v1443
        %v2438 = vadd.f32 %v2434, %v1443
        %v2439 = vadd.f32 %v2435, %v1443
        %v2440 = vadd.f32 %v2436, %v1443
        %v2441 = vsub.f32 0.0, %v2437
        %v2442 = vsub.f32 0.0, %v2438
        %v2443 = vsub.f32 0.0, %v2439
        %v2444 = vsub.f32 0.0, %v2440
        %v2445 = vmul.f32 %v2441, 1.442695
        %v2446 = vpow.pop %v2445
        %v2447 = vmul.f32 %v2442, 1.442695
        %v2448 = vpow.pop %v2447
        %v2449 = vmul.f32 %v2443, 1.442695
        %v2450 = vpow.pop %v2449
        %v2451 = vmul.f32 %v2444, 1.442695
        %v2452 = vpow.pop %v2451
        %v2453 = vadd.f32 %v2446, 1.0
        %v2454 = vadd.f32 %v2448, 1.0
        %v2455 = vadd.f32 %v2450, 1.0
        %v2456 = vadd.f32 %v2452, 1.0
        %v2457 = vrcp.pop %v2453
        %v2458 = vrcp.pop %v2454
        %v2459 = vrcp.pop %v2455
        %v2460 = vrcp.pop %v2456
        %v2461 = vmul.f32 %v2437, %v2457
        %v2462 = vmul.f32 %v2438, %v2458
        %v2463 = vmul.f32 %v2439, %v2459
        %v2464 = vmul.f32 %v2440, %v2460
        %v2465 = vld [vmem:[#allocation12] sm:$0xff]
        %v2466 = vld [vmem:[#allocation12 + $0x8] sm:$0xff]
        %v2467 = vld [vmem:[#allocation12 + $0x10] sm:$0xff]
        %v2468 = vld [vmem:[#allocation12 + $0x18] sm:$0xff]
        %v2469 = vld [vmem:[#allocation12 + $0x20] sm:$0xff]
        %v2470 = vld [vmem:[#allocation12 + $0x28] sm:$0xff]
        %v2471 = vld [vmem:[#allocation12 + $0x30] sm:$0xff]
        %v2472 = vld [vmem:[#allocation12 + $0x38] sm:$0xff]
        %v2473 = vld [vmem:[#allocation12 + $0x40] sm:$0xff]
        %v2474 = vld [vmem:[#allocation12 + $0x48] sm:$0xff]
        %v2475 = vld [vmem:[#allocation12 + $0x50] sm:$0xff]
        %v2476 = vld [vmem:[#allocation12 + $0x58] sm:$0xff]
        %v2477 = vld [vmem:[#allocation12 + $0x60] sm:$0xff]
        %v2478 = vld [vmem:[#allocation12 + $0x68] sm:$0xff]
        %v2479 = vld [vmem:[#allocation12 + $0x70] sm:$0xff]
        %v2480 = vld [vmem:[#allocation12 + $0x78] sm:$0xff]
        %2481 = vmatpush.msra.mxu0 %v2480
        %2482 = vmatpush.msra.mxu0 %v2479
        %2483 = vmatpush.msra.mxu0 %v2478
        %2484 = vmatpush.msra.mxu0 %v2477
        %2485 = vmatpush.msra.mxu0 %v2476
        %2486 = vmatpush.msra.mxu0 %v2475
        %2487 = vmatpush.msra.mxu0 %v2474
        %2488 = vmatpush.msra.mxu0 %v2473
        %2489 = vmatpush.msra.mxu0 %v2472
        %2490 = vmatpush.msra.mxu0 %v2471
        %2491 = vmatpush.msra.mxu0 %v2470
        %2492 = vmatpush.msra.mxu0 %v2469
        %2493 = vmatpush.msra.mxu0 %v2468
        %2494 = vmatpush.msra.mxu0 %v2467
        %2495 = vmatpush.msra.mxu0 %v2466
        %2496 = vmatpush.msra.mxu0 %v2465
        %2497 = vmatmul.f32.gmra.mxu0 %v392
        %v2498 = vpop.f32.mrf.mxu0
        %v2499 = vadd.f32 0.0, %v2498
        %2500 = vmatmul.f32.gmra.mxu0 %v393
        %v2501 = vpop.f32.mrf.mxu0
        %v2502 = vadd.f32 0.0, %v2501
        %2503 = vmatmul.f32.gmra.mxu0 %v394
        %v2504 = vpop.f32.mrf.mxu0
        %v2505 = vadd.f32 0.0, %v2504
        %2506 = vmatmul.f32.gmra.mxu0 %v395
        %v2507 = vpop.f32.mrf.mxu0
        %v2508 = vadd.f32 0.0, %v2507
        %2509 = vdwg.mxu0
        %v2510 = vadd.f32 %v2461, %v2499
        %v2511 = vadd.f32 %v2462, %v2502
        %v2512 = vadd.f32 %v2463, %v2505
        %v2513 = vadd.f32 %v2464, %v2508
        %2514 = vst [vmem:[%s391] sm:$0xff] %v2510
        %2515 = vst [vmem:[%s391 + $0x8] sm:$0xff] %v2511
        %2516 = vst [vmem:[%s391 + $0x10] sm:$0xff] %v2512
        %2517 = vst [vmem:[%s391 + $0x18] sm:$0xff] %v2513
        %s2518 = sand.u32 %s208, 1
        %s2519 = scalar_lea.sflag [#allocation6], %s2518
        %s2520 = sand.u32 %s208, 1
        %s2521 = smul.addr %s2520, 32
        %s2522 = scalar_lea.vmem [#allocation13], %s2521
        // Predicated region
        $region73: #{tpu_custom_call.1} parent=51 // pred_check
          %p2523 = pneg %p218
        $region74: #{tpu_custom_call.1} parent=51 // pred_check_branch
          %2525 = sbr.rel (%p2523) target = $region76
        $region75: #{tpu_custom_call.1} parent=51 // pred_region
          %2527 = vsyncadd %s2519, 0
          %s2528 = smul.addr %s27, 4
          %s2529 = smul.addr %s2528, 8
          %s2530 = scalar_lea.hbm %s8, %s2529
          %s2531 = sshll.u32 %s2522, 4
          %s2532 = int_to_ptr.vmem [resolvable:$true] %s2531
          %s2533 = sshll.u32 %s2530, 4
          %s2534 = int_to_ptr.hbm [resolvable:$true] %s2533
          %2539 = dma.vmem_to_hbm [thread:$0]  %s2532, 512, %s2534, %s2519, 128, 128, 8
        $region76: #{tpu_custom_call.1} parent=51 // pred_fallthru
          _
      $region52: #{tpu_custom_call.1} parent=5 // pred_fallthru
        _
      %p2540 = scmp.le.s32.totalorder 2, %s22
      // Predicated region
      $region77: #{tpu_custom_call.1} parent=5 // pred_check
        %p2541 = pneg %p2540
      $region78: #{tpu_custom_call.1} parent=5 // pred_check_branch
        %2543 = sbr.rel (%p2541) target = $region80
      $region79: #{tpu_custom_call.1} parent=5 // pred_region
        %s2544 = ssub.s32 %s22, 2
        // Predicated region
        $region81: #{tpu_custom_call.1} parent=79 // pred_check
          %p2545 = pneg %p224
        $region82: #{tpu_custom_call.1} parent=79 // pred_check_branch
          %2547 = sbr.rel (%p2545) target = $region84
        $region83: #{tpu_custom_call.1} parent=79 // pred_region
          %s2548 = sand.u32 %s209, 1
          %s2549 = scalar_lea.sflag [#allocation6], %s2548
          %s2550 = sand.u32 %s209, 1
          %s2551 = smul.addr %s2550, 32
          %s2552 = scalar_lea.vmem [#allocation13], %s2551
          %2554 = dma.done %s2549, 512
        $region84: #{tpu_custom_call.1} parent=79 // pred_fallthru
          _
      $region80: #{tpu_custom_call.1} parent=5 // pred_fallthru
        _
    $region6: #{tpu_custom_call.1} parent=1 // loop_footer
      %s26 = sadd.s32 1, %s22
    $region7: #{tpu_custom_call.1} parent=1 // loop_footer_branch
      %21 = sbr.rel target = $region3
    $region8: #{tpu_custom_call.1} parent=1 // loop_exit
      _
    %2555 = vsyncpa [#allocation5], 1
    %s2556 = scalar_lea.sflag [#allocation5], 1
    %2557 = vsyncpa %s2556, 1
    %2558 = vsyncpa [#allocation8], 1
    %2559 = vsyncpa [#allocation11], 1
    %2560 = vsyncpa [#allocation6], 1
    %s2561 = scalar_lea.sflag [#allocation6], 1
    %2562 = vsyncpa %s2561, 1

</llo_original>
